<compile_context>
chip_gen: v7x
topology: tpu7x:2x2x1
jax: 0.10.0
libtpu: 0.0.40
codegen_flags: <defaults>
</compile_context>

<pallas_src>
import jax
import jax.numpy as jnp
import numpy as np
from jax.experimental import pallas as pl
from jax.experimental.pallas import tpu as pltpu

EPS = 1e-5
LANE = 128  # pad out-channels to this many lanes for dense stores


# ----------------------------- Pallas kernels ------------------------------

def mm_bias_bn_relu_kernel(p_ref, w_ref, b_ref, g_ref, be_ref, o_ref):
    # p_ref: [M, K]   w_ref: [K, LANE]   b/g/be: [1, LANE]   o_ref: [M, LANE]
    # Default MXU precision (bf16 multiply) with an f32 accumulator.
    x = jnp.dot(p_ref[...], w_ref[...], preferred_element_type=jnp.float32)
    x = x + b_ref[...]
    # BatchNorm2d (training mode): per-channel mean / biased var over all
    # M = N*OH*OW rows.  Epilogue kept fully in f32 (VPU/EUP friendly on v5e).
    mean = jnp.mean(x, axis=0, keepdims=True)
    var = jnp.mean(jnp.square(x - mean), axis=0, keepdims=True)
    y = (x - mean) * jax.lax.rsqrt(var + EPS)
    y = y * g_ref[...] + be_ref[...]
    o_ref[...] = jnp.maximum(y, 0.0)


def mm_bias_tanh_kernel(p_ref, w_ref, b_ref, o_ref):
    # p_ref: [tm, K]  w_ref: [K, LANE]  b_ref: [1, LANE]  o_ref: [tm, LANE]
    x = jnp.dot(p_ref[...], w_ref[...], preferred_element_type=jnp.float32)
    o_ref[...] = jnp.tanh(x + b_ref[...])


# --------------------------- pallas_call wrappers ----------------------------

def _whole_vmem(n):
    return [pl.BlockSpec(memory_space=pltpu.MemorySpace.VMEM)] * n


def matmul_bn_relu(patches, w_mat, b, g, be):
    """patches: [M, K]; w_mat: [K, LANE]; b/g/be: [1, LANE] -> [M, LANE]."""
    M = patches.shape[0]
    return pl.pallas_call(
        mm_bias_bn_relu_kernel,
        out_shape=jax.ShapeDtypeStruct((M, LANE), jnp.float32),
        in_specs=_whole_vmem(5),
        out_specs=pl.BlockSpec(memory_space=pltpu.MemorySpace.VMEM),
    )(patches, w_mat, b, g, be)


def _pick_tile(m, target=512):
    """Largest tile <= target that is a multiple of 8 and divides m exactly."""
    if m <= target:
        return m
    start = target - (target % 8)
    for t in range(start, 7, -8):
        if m % t == 0:
            return t
    return m


def matmul_tanh(patches, w_mat, b):
    """M-tiled matmul + bias + tanh.  patches: [M, K] -> [M, LANE]."""
    M, K = patches.shape
    tm = _pick_tile(M)
    grid = (M // tm,)
    return pl.pallas_call(
        mm_bias_tanh_kernel,
        out_shape=jax.ShapeDtypeStruct((M, LANE), jnp.float32),
        grid=grid,
        in_specs=[
            pl.BlockSpec((tm, K), lambda i: (i, 0)),
            pl.BlockSpec((K, LANE), lambda i: (0, 0)),
            pl.BlockSpec((1, LANE), lambda i: (0, 0)),
        ],
        out_specs=pl.BlockSpec((tm, LANE), lambda i: (i, 0)),
        compiler_params=pltpu.CompilerParams(
            dimension_semantics=("parallel",)),
    )(patches, w_mat, b)


# ------------------------------- JAX glue (NHWC) -----------------------------

def dilate_and_pad_nhwc(x, stride, pad_amt):
    """Zero-insert between pixels (lhs dilation) + symmetric spatial padding."""
    N, H, W, C = x.shape
    if stride > 1:
        HD, WD = (H - 1) * stride + 1, (W - 1) * stride + 1
        xd = jnp.zeros((N, HD, WD, C), x.dtype)
        xd = xd.at[:, ::stride, ::stride, :].set(x)
    else:
        xd = x
    return jnp.pad(xd, ((0, 0), (pad_amt, pad_amt), (pad_amt, pad_amt), (0, 0)))


def im2col_nhwc(xp, KH, KW):
    """xp: [N, Hp, Wp, C] -> patches [N*OH*OW, KH*KW*C] (tap-major, C-minor)."""
    N, Hp, Wp, C = xp.shape
    OH, OW = Hp - KH + 1, Wp - KW + 1
    cols = [xp[:, kh:kh + OH, kw:kw + OW, :]
            for kh in range(KH) for kw in range(KW)]      # each [N, OH, OW, C]
    p = jnp.concatenate(cols, axis=-1)                    # [N, OH, OW, KH*KW*C]
    return p.reshape(N * OH * OW, KH * KW * C), N, OH, OW


def conv_transpose_layer(x_nhwc, w, b, stride, padding, gamma=None, beta=None,
                         final=False):
    """ConvTranspose2d (+BN+ReLU or +Tanh).  x: NHWC, w: [Cin, Cout, KH, KW]."""
    Cin, Cout, KH, KW = w.shape
    assert Cout <= LANE
    xp = dilate_and_pad_nhwc(x_nhwc, stride, KH - 1 - padding)
    patches, N, OH, OW = im2col_nhwc(xp, KH, KW)

    # Equivalent correlation weight: flip spatially, layout [KH*KW*Cin, Cout],
    # then zero-pad Cout -> LANE so the kernel's output is lane-dense.
    w_mat = jnp.flip(w, axis=(2, 3)).transpose(2, 3, 0, 1)
    w_mat = w_mat.reshape(KH * KW * Cin, Cout)
    cpad = LANE - Cout
    w_mat = jnp.pad(w_mat, ((0, 0), (0, cpad)))
    b_p = jnp.pad(b, (0, cpad)).reshape(1, LANE)

    if final:
        y = matmul_tanh(patches, w_mat, b_p)
    else:
        g_p = jnp.pad(gamma, (0, cpad)).reshape(1, LANE)
        be_p = jnp.pad(beta, (0, cpad)).reshape(1, LANE)
        y = matmul_bn_relu(patches, w_mat, b_p, g_p, be_p)

    # Slice the padded lanes off and restore NHWC (no NCHW round-trip here).
    return y[:, :Cout].reshape(N, OH, OW, Cout)


@jax.jit
def generator_forward(x_nchw, params):
    x = x_nchw.transpose(0, 2, 3, 1)                      # NCHW -> NHWC (once)
    out = conv_transpose_layer(x, params["w1"], params["b1"], 1, 0,
                               params["g1"], params["be1"])
    out = conv_transpose_layer(out, params["w2"], params["b2"], 2, 1,
                               params["g2"], params["be2"])
    out = conv_transpose_layer(out, params["w3"], params["b3"], 2, 1,
                               params["g3"], params["be3"])
    out = conv_transpose_layer(out, params["w4"], params["b4"], 2, 1,
                               final=True)
    return out.transpose(0, 3, 1, 2)                      # NHWC -> NCHW (once)


# ------------------------- pure-JAX reference (check) -----------------------

def _convT_ref(x, w, b, stride, padding):
    Cin, Cout, KH, KW = w.shape
    w_conv = jnp.flip(w, axis=(2, 3)).transpose(1, 0, 2, 3)  # OIHW
    y = jax.lax.conv_general_dilated(
        x, w_conv, window_strides=(1, 1),
        padding=[(KH - 1 - padding,) * 2, (KW - 1 - padding,) * 2],
        lhs_dilation=(stride, stride),
        dimension_numbers=("NCHW", "OIHW", "NCHW"),
        precision=jax.lax.Precision.HIGHEST)
    return y + b[None, :, None, None]


def _bn_relu_ref(x, gamma, beta):
    mean = jnp.mean(x, axis=(0, 2, 3), keepdims=True)
    var = jnp.mean(jnp.square(x - mean), axis=(0, 2, 3), keepdims=True)
    y = (x - mean) * jax.lax.rsqrt(var + EPS)
    y = y * gamma[None, :, None, None] + beta[None, :, None, None]
    return jnp.maximum(y, 0.0)


def generator_ref(x, p):
    out = _bn_relu_ref(_convT_ref(x, p["w1"], p["b1"], 1, 0), p["g1"], p["be1"])
    out = _bn_relu_ref(_convT_ref(out, p["w2"], p["b2"], 2, 1), p["g2"], p["be2"])
    out = _bn_relu_ref(_convT_ref(out, p["w3"], p["b3"], 2, 1), p["g3"], p["be3"])
    return jnp.tanh(_convT_ref(out, p["w4"], p["b4"], 2, 1))


# ------------------------------- params -------------------------------------

def init_params(key, len_Z, hidden, out_c):
    specs = {  # name: (Cin, Cout, K)
        1: (len_Z, hidden * 4, 4),
        2: (hidden * 4, hidden * 2, 3),
        3: (hidden * 2, hidden, 4),
        4: (hidden, out_c, 4),
    }
    params = {}
    for i, (cin, cout, k) in specs.items():
        kw, kb = jax.random.split(jax.random.fold_in(key, i))
        bound = 1.0 / np.sqrt(cin * k * k)
        params[f"w{i}"] = jax.random.uniform(kw, (cin, cout, k, k), jnp.float32,
                                             -bound, bound)
        params[f"b{i}"] = jax.random.uniform(kb, (cout,), jnp.float32,
                                             -bound, bound)
        if i != 4:  # BatchNorm2d defaults: weight=1, bias=0
            params[f"g{i}"] = jnp.ones((cout,), jnp.float32)
            params[f"be{i}"] = jnp.zeros((cout,), jnp.float32)
    return params


if __name__ == "__main__":
    key = jax.random.PRNGKey(0)
    N, len_Z, hidden, out_c = 2, 8, 4, 3
    params = init_params(key, len_Z, hidden, out_c)
    # Standard DCGAN generator input: [N, len_Z, 1, 1]
    x = jax.random.normal(jax.random.fold_in(key, 999), (N, len_Z, 1, 1),
                          jnp.float32)

    y = jax.block_until_ready(generator_forward(x, params))
    assert y.shape == (N, out_c, 28, 28), y.shape

    y_ref = jax.block_until_ready(generator_ref(x, params))
    np.testing.assert_allclose(np.asarray(y), np.asarray(y_ref),
                               atol=2e-2, rtol=2e-2)
    print("KERNEL_OK")
</pallas_src>

<mosaic_0001>
module attributes {stable_mosaic.version = 11 : i64} {
  func.func @mm_bias_bn_relu_kernel(%arg0: memref<32x128xf32, #tpu.memory_space<vmem>>, %arg1: memref<128x128xf32, #tpu.memory_space<vmem>>, %arg2: memref<1x128xf32, #tpu.memory_space<vmem>>, %arg3: memref<1x128xf32, #tpu.memory_space<vmem>>, %arg4: memref<1x128xf32, #tpu.memory_space<vmem>>, %arg5: memref<32x128xf32, #tpu.memory_space<vmem>>) attributes {dimension_semantics = [], scalar_prefetch = 0 : i64, scratch_operands = 0 : i64, tpu.core_type = #tpu.core_type<tc>} {
    %c0 = arith.constant 0 : index
    %c0_0 = arith.constant 0 : index
    %0 = vector.load %arg0[%c0, %c0_0] : memref<32x128xf32, #tpu.memory_space<vmem>>, vector<32x128xf32>
    %c0_1 = arith.constant 0 : index
    %c0_2 = arith.constant 0 : index
    %1 = vector.load %arg1[%c0_1, %c0_2] : memref<128x128xf32, #tpu.memory_space<vmem>>, vector<128x128xf32>
    %cst = arith.constant dense<0.000000e+00> : vector<32x128xf32>
    %2 = tpu.matmul %0, %1, %cst {dimension_numbers = #tpu.dot_dimension_numbers<[1], [0], [0], [1], [0, 0, 1, 1], [], []>} : vector<32x128xf32>, vector<128x128xf32>, vector<32x128xf32> -> vector<32x128xf32>
    %c0_3 = arith.constant 0 : index
    %c0_4 = arith.constant 0 : index
    %3 = vector.load %arg2[%c0_3, %c0_4] : memref<1x128xf32, #tpu.memory_space<vmem>>, vector<1x128xf32>
    %4 = vector.broadcast %3 : vector<1x128xf32> to vector<32x128xf32>
    %5 = arith.addf %2, %4 : vector<32x128xf32>
    %cst_5 = arith.constant dense<0.000000e+00> : vector<128xf32>
    %6 = vector.multi_reduction <add>, %5, %cst_5 [0] : vector<32x128xf32> to vector<128xf32>
    %7 = vector.shape_cast %6 : vector<128xf32> to vector<1x128xf32>
    %cst_6 = arith.constant 3.200000e+01 : f32
    %8 = vector.broadcast %cst_6 : f32 to vector<1x128xf32>
    %9 = arith.divf %7, %8 : vector<1x128xf32>
    %10 = vector.broadcast %9 : vector<1x128xf32> to vector<32x128xf32>
    %11 = arith.subf %5, %10 : vector<32x128xf32>
    %12 = arith.mulf %11, %11 : vector<32x128xf32>
    %cst_7 = arith.constant dense<0.000000e+00> : vector<128xf32>
    %13 = vector.multi_reduction <add>, %12, %cst_7 [0] : vector<32x128xf32> to vector<128xf32>
    %14 = vector.shape_cast %13 : vector<128xf32> to vector<1x128xf32>
    %cst_8 = arith.constant 3.200000e+01 : f32
    %15 = vector.broadcast %cst_8 : f32 to vector<1x128xf32>
    %16 = arith.divf %14, %15 : vector<1x128xf32>
    %17 = vector.broadcast %9 : vector<1x128xf32> to vector<32x128xf32>
    %18 = arith.subf %5, %17 : vector<32x128xf32>
    %cst_9 = arith.constant 9.99999974E-6 : f32
    %19 = vector.broadcast %cst_9 : f32 to vector<1x128xf32>
    %20 = arith.addf %16, %19 : vector<1x128xf32>
    %21 = math.rsqrt %20 : vector<1x128xf32>
    %22 = vector.broadcast %21 : vector<1x128xf32> to vector<32x128xf32>
    %23 = arith.mulf %18, %22 : vector<32x128xf32>
    %c0_10 = arith.constant 0 : index
    %c0_11 = arith.constant 0 : index
    %24 = vector.load %arg3[%c0_10, %c0_11] : memref<1x128xf32, #tpu.memory_space<vmem>>, vector<1x128xf32>
    %25 = vector.broadcast %24 : vector<1x128xf32> to vector<32x128xf32>
    %26 = arith.mulf %23, %25 : vector<32x128xf32>
    %c0_12 = arith.constant 0 : index
    %c0_13 = arith.constant 0 : index
    %27 = vector.load %arg4[%c0_12, %c0_13] : memref<1x128xf32, #tpu.memory_space<vmem>>, vector<1x128xf32>
    %28 = vector.broadcast %27 : vector<1x128xf32> to vector<32x128xf32>
    %29 = arith.addf %26, %28 : vector<32x128xf32>
    %cst_14 = arith.constant 0.000000e+00 : f32
    %30 = vector.broadcast %cst_14 : f32 to vector<32x128xf32>
    %31 = arith.maximumf %29, %30 : vector<32x128xf32>
    %c0_15 = arith.constant 0 : index
    %c0_16 = arith.constant 0 : index
    %32 = vector.load %arg5[%c0_15, %c0_16] : memref<32x128xf32, #tpu.memory_space<vmem>>, vector<32x128xf32>
    tpu.vector_store %arg5[%c0_15, %c0_16], %31 {strides = array<i32>} : memref<32x128xf32, #tpu.memory_space<vmem>>, vector<32x128xf32>,
    return
  }
}

module attributes {stable_mosaic.version = 11 : i64} {
  func.func @mm_bias_bn_relu_kernel(%arg0: memref<98x144xf32, #tpu.memory_space<vmem>>, %arg1: memref<144x128xf32, #tpu.memory_space<vmem>>, %arg2: memref<1x128xf32, #tpu.memory_space<vmem>>, %arg3: memref<1x128xf32, #tpu.memory_space<vmem>>, %arg4: memref<1x128xf32, #tpu.memory_space<vmem>>, %arg5: memref<98x128xf32, #tpu.memory_space<vmem>>) attributes {dimension_semantics = [], scalar_prefetch = 0 : i64, scratch_operands = 0 : i64, tpu.core_type = #tpu.core_type<tc>} {
    %c0 = arith.constant 0 : index
    %c0_0 = arith.constant 0 : index
    %0 = vector.load %arg0[%c0, %c0_0] : memref<98x144xf32, #tpu.memory_space<vmem>>, vector<98x144xf32>
    %c0_1 = arith.constant 0 : index
    %c0_2 = arith.constant 0 : index
    %1 = vector.load %arg1[%c0_1, %c0_2] : memref<144x128xf32, #tpu.memory_space<vmem>>, vector<144x128xf32>
    %cst = arith.constant dense<0.000000e+00> : vector<98x128xf32>
    %2 = tpu.matmul %0, %1, %cst {dimension_numbers = #tpu.dot_dimension_numbers<[1], [0], [0], [1], [0, 0, 1, 1], [], []>} : vector<98x144xf32>, vector<144x128xf32>, vector<98x128xf32> -> vector<98x128xf32>
    %c0_3 = arith.constant 0 : index
    %c0_4 = arith.constant 0 : index
    %3 = vector.load %arg2[%c0_3, %c0_4] : memref<1x128xf32, #tpu.memory_space<vmem>>, vector<1x128xf32>
    %4 = vector.broadcast %3 : vector<1x128xf32> to vector<98x128xf32>
    %5 = arith.addf %2, %4 : vector<98x128xf32>
    %cst_5 = arith.constant dense<0.000000e+00> : vector<128xf32>
    %6 = vector.multi_reduction <add>, %5, %cst_5 [0] : vector<98x128xf32> to vector<128xf32>
    %7 = vector.shape_cast %6 : vector<128xf32> to vector<1x128xf32>
    %cst_6 = arith.constant 9.800000e+01 : f32
    %8 = vector.broadcast %cst_6 : f32 to vector<1x128xf32>
    %9 = arith.divf %7, %8 : vector<1x128xf32>
    %10 = vector.broadcast %9 : vector<1x128xf32> to vector<98x128xf32>
    %11 = arith.subf %5, %10 : vector<98x128xf32>
    %12 = arith.mulf %11, %11 : vector<98x128xf32>
    %cst_7 = arith.constant dense<0.000000e+00> : vector<128xf32>
    %13 = vector.multi_reduction <add>, %12, %cst_7 [0] : vector<98x128xf32> to vector<128xf32>
    %14 = vector.shape_cast %13 : vector<128xf32> to vector<1x128xf32>
    %cst_8 = arith.constant 9.800000e+01 : f32
    %15 = vector.broadcast %cst_8 : f32 to vector<1x128xf32>
    %16 = arith.divf %14, %15 : vector<1x128xf32>
    %17 = vector.broadcast %9 : vector<1x128xf32> to vector<98x128xf32>
    %18 = arith.subf %5, %17 : vector<98x128xf32>
    %cst_9 = arith.constant 9.99999974E-6 : f32
    %19 = vector.broadcast %cst_9 : f32 to vector<1x128xf32>
    %20 = arith.addf %16, %19 : vector<1x128xf32>
    %21 = math.rsqrt %20 : vector<1x128xf32>
    %22 = vector.broadcast %21 : vector<1x128xf32> to vector<98x128xf32>
    %23 = arith.mulf %18, %22 : vector<98x128xf32>
    %c0_10 = arith.constant 0 : index
    %c0_11 = arith.constant 0 : index
    %24 = vector.load %arg3[%c0_10, %c0_11] : memref<1x128xf32, #tpu.memory_space<vmem>>, vector<1x128xf32>
    %25 = vector.broadcast %24 : vector<1x128xf32> to vector<98x128xf32>
    %26 = arith.mulf %23, %25 : vector<98x128xf32>
    %c0_12 = arith.constant 0 : index
    %c0_13 = arith.constant 0 : index
    %27 = vector.load %arg4[%c0_12, %c0_13] : memref<1x128xf32, #tpu.memory_space<vmem>>, vector<1x128xf32>
    %28 = vector.broadcast %27 : vector<1x128xf32> to vector<98x128xf32>
    %29 = arith.addf %26, %28 : vector<98x128xf32>
    %cst_14 = arith.constant 0.000000e+00 : f32
    %30 = vector.broadcast %cst_14 : f32 to vector<98x128xf32>
    %31 = arith.maximumf %29, %30 : vector<98x128xf32>
    %c0_15 = arith.constant 0 : index
    %c0_16 = arith.constant 0 : index
    %32 = vector.load %arg5[%c0_15, %c0_16] : memref<98x128xf32, #tpu.memory_space<vmem>>, vector<98x128xf32>
    tpu.vector_store %arg5[%c0_15, %c0_16], %31 {strides = array<i32>} : memref<98x128xf32, #tpu.memory_space<vmem>>, vector<98x128xf32>,
    return
  }
}

module attributes {stable_mosaic.version = 11 : i64} {
  func.func @mm_bias_bn_relu_kernel(%arg0: memref<392x128xf32, #tpu.memory_space<vmem>>, %arg1: memref<128x128xf32, #tpu.memory_space<vmem>>, %arg2: memref<1x128xf32, #tpu.memory_space<vmem>>, %arg3: memref<1x128xf32, #tpu.memory_space<vmem>>, %arg4: memref<1x128xf32, #tpu.memory_space<vmem>>, %arg5: memref<392x128xf32, #tpu.memory_space<vmem>>) attributes {dimension_semantics = [], scalar_prefetch = 0 : i64, scratch_operands = 0 : i64, tpu.core_type = #tpu.core_type<tc>} {
    %c0 = arith.constant 0 : index
    %c0_0 = arith.constant 0 : index
    %0 = vector.load %arg0[%c0, %c0_0] : memref<392x128xf32, #tpu.memory_space<vmem>>, vector<392x128xf32>
    %c0_1 = arith.constant 0 : index
    %c0_2 = arith.constant 0 : index
    %1 = vector.load %arg1[%c0_1, %c0_2] : memref<128x128xf32, #tpu.memory_space<vmem>>, vector<128x128xf32>
    %cst = arith.constant dense<0.000000e+00> : vector<392x128xf32>
    %2 = tpu.matmul %0, %1, %cst {dimension_numbers = #tpu.dot_dimension_numbers<[1], [0], [0], [1], [0, 0, 1, 1], [], []>} : vector<392x128xf32>, vector<128x128xf32>, vector<392x128xf32> -> vector<392x128xf32>
    %c0_3 = arith.constant 0 : index
    %c0_4 = arith.constant 0 : index
    %3 = vector.load %arg2[%c0_3, %c0_4] : memref<1x128xf32, #tpu.memory_space<vmem>>, vector<1x128xf32>
    %4 = vector.broadcast %3 : vector<1x128xf32> to vector<392x128xf32>
    %5 = arith.addf %2, %4 : vector<392x128xf32>
    %cst_5 = arith.constant dense<0.000000e+00> : vector<128xf32>
    %6 = vector.multi_reduction <add>, %5, %cst_5 [0] : vector<392x128xf32> to vector<128xf32>
    %7 = vector.shape_cast %6 : vector<128xf32> to vector<1x128xf32>
    %cst_6 = arith.constant 3.920000e+02 : f32
    %8 = vector.broadcast %cst_6 : f32 to vector<1x128xf32>
    %9 = arith.divf %7, %8 : vector<1x128xf32>
    %10 = vector.broadcast %9 : vector<1x128xf32> to vector<392x128xf32>
    %11 = arith.subf %5, %10 : vector<392x128xf32>
    %12 = arith.mulf %11, %11 : vector<392x128xf32>
    %cst_7 = arith.constant dense<0.000000e+00> : vector<128xf32>
    %13 = vector.multi_reduction <add>, %12, %cst_7 [0] : vector<392x128xf32> to vector<128xf32>
    %14 = vector.shape_cast %13 : vector<128xf32> to vector<1x128xf32>
    %cst_8 = arith.constant 3.920000e+02 : f32
    %15 = vector.broadcast %cst_8 : f32 to vector<1x128xf32>
    %16 = arith.divf %14, %15 : vector<1x128xf32>
    %17 = vector.broadcast %9 : vector<1x128xf32> to vector<392x128xf32>
    %18 = arith.subf %5, %17 : vector<392x128xf32>
    %cst_9 = arith.constant 9.99999974E-6 : f32
    %19 = vector.broadcast %cst_9 : f32 to vector<1x128xf32>
    %20 = arith.addf %16, %19 : vector<1x128xf32>
    %21 = math.rsqrt %20 : vector<1x128xf32>
    %22 = vector.broadcast %21 : vector<1x128xf32> to vector<392x128xf32>
    %23 = arith.mulf %18, %22 : vector<392x128xf32>
    %c0_10 = arith.constant 0 : index
    %c0_11 = arith.constant 0 : index
    %24 = vector.load %arg3[%c0_10, %c0_11] : memref<1x128xf32, #tpu.memory_space<vmem>>, vector<1x128xf32>
    %25 = vector.broadcast %24 : vector<1x128xf32> to vector<392x128xf32>
    %26 = arith.mulf %23, %25 : vector<392x128xf32>
    %c0_12 = arith.constant 0 : index
    %c0_13 = arith.constant 0 : index
    %27 = vector.load %arg4[%c0_12, %c0_13] : memref<1x128xf32, #tpu.memory_space<vmem>>, vector<1x128xf32>
    %28 = vector.broadcast %27 : vector<1x128xf32> to vector<392x128xf32>
    %29 = arith.addf %26, %28 : vector<392x128xf32>
    %cst_14 = arith.constant 0.000000e+00 : f32
    %30 = vector.broadcast %cst_14 : f32 to vector<392x128xf32>
    %31 = arith.maximumf %29, %30 : vector<392x128xf32>
    %c0_15 = arith.constant 0 : index
    %c0_16 = arith.constant 0 : index
    %32 = vector.load %arg5[%c0_15, %c0_16] : memref<392x128xf32, #tpu.memory_space<vmem>>, vector<392x128xf32>
    tpu.vector_store %arg5[%c0_15, %c0_16], %31 {strides = array<i32>} : memref<392x128xf32, #tpu.memory_space<vmem>>, vector<392x128xf32>,
    return
  }
}

module attributes {stable_mosaic.version = 11 : i64} {
  func.func @mm_bias_tanh_kernel(%arg0: i32, %arg1: memref<392x64xf32, #tpu.memory_space<vmem>>, %arg2: memref<64x128xf32, #tpu.memory_space<vmem>>, %arg3: memref<1x128xf32, #tpu.memory_space<vmem>>, %arg4: memref<392x128xf32, #tpu.memory_space<vmem>>) attributes {dimension_semantics = [#tpu.dimension_semantics<parallel>], iteration_bounds = array<i64: 4>, scalar_prefetch = 0 : i64, scratch_operands = 0 : i64, tpu.core_type = #tpu.core_type<tc>, window_params = [{transform_indices = @transform_0, window_bounds = array<i64: 392, 64>}, {pipeline_mode = #tpu.pipeline_mode<synchronous>, transform_indices = @transform_1, window_bounds = array<i64: 64, 128>}, {pipeline_mode = #tpu.pipeline_mode<synchronous>, transform_indices = @transform_2, window_bounds = array<i64: 1, 128>}, {transform_indices = @transform_3, window_bounds = array<i64: 392, 128>}]} {
    %c0 = arith.constant 0 : index
    %c0_0 = arith.constant 0 : index
    %0 = vector.load %arg1[%c0, %c0_0] : memref<392x64xf32, #tpu.memory_space<vmem>>, vector<392x64xf32>
    %c0_1 = arith.constant 0 : index
    %c0_2 = arith.constant 0 : index
    %1 = vector.load %arg2[%c0_1, %c0_2] : memref<64x128xf32, #tpu.memory_space<vmem>>, vector<64x128xf32>
    %cst = arith.constant dense<0.000000e+00> : vector<392x128xf32>
    %2 = tpu.matmul %0, %1, %cst {dimension_numbers = #tpu.dot_dimension_numbers<[1], [0], [0], [1], [0, 0, 1, 1], [], []>} : vector<392x64xf32>, vector<64x128xf32>, vector<392x128xf32> -> vector<392x128xf32>
    %c0_3 = arith.constant 0 : index
    %c0_4 = arith.constant 0 : index
    %3 = vector.load %arg3[%c0_3, %c0_4] : memref<1x128xf32, #tpu.memory_space<vmem>>, vector<1x128xf32>
    %4 = vector.broadcast %3 : vector<1x128xf32> to vector<392x128xf32>
    %5 = arith.addf %2, %4 : vector<392x128xf32>
    %6 = math.tanh %5 : vector<392x128xf32>
    %c0_5 = arith.constant 0 : index
    %c0_6 = arith.constant 0 : index
    %7 = vector.load %arg4[%c0_5, %c0_6] : memref<392x128xf32, #tpu.memory_space<vmem>>, vector<392x128xf32>
    tpu.vector_store %arg4[%c0_5, %c0_6], %6 {strides = array<i32>} : memref<392x128xf32, #tpu.memory_space<vmem>>, vector<392x128xf32>,
    return
  }
  func.func @transform_0(%arg0: i32) -> (i32, i32) {
    %c0_i32 = arith.constant 0 : i32
    %c0_i32_0 = arith.constant 0 : i32
    return %arg0, %c0_i32 : i32, i32
  }
  func.func @transform_1(%arg0: i32) -> (i32, i32) {
    %c0_i32 = arith.constant 0 : i32
    %c0_i32_0 = arith.constant 0 : i32
    %c0_i32_1 = arith.constant 0 : i32
    return %c0_i32, %c0_i32_0 : i32, i32
  }
  func.func @transform_2(%arg0: i32) -> (i32, i32) {
    %c0_i32 = arith.constant 0 : i32
    %c0_i32_0 = arith.constant 0 : i32
    %c0_i32_1 = arith.constant 0 : i32
    return %c0_i32, %c0_i32_0 : i32, i32
  }
  func.func @transform_3(%arg0: i32) -> (i32, i32) {
    %c0_i32 = arith.constant 0 : i32
    %c0_i32_0 = arith.constant 0 : i32
    return %arg0, %c0_i32 : i32, i32
  }
}

</mosaic_0001>

<llo_original>
// kernel: generator_forward.4
$region0: #{generator_forward.4}
  #allocation0 [shape = 'u32[]', space=smem, size = 0x4, offset = 0x4, fixed_abs, tag = 'smem constant byte address 0x4 - core index']
  #allocation1 [shape = 'u32[144,128]{1,0:T(1,128)}', space=vmem, size = 0x12000, scoped, tag = 'internal scratch']
  %s0 = inlined_call_operand.vmem [shape: f32[32,128], index: 0, kind: input, shape index: {}]
  %s1 = inlined_call_operand.vmem [shape: f32[128,128], index: 1, kind: input, shape index: {}]
  %s2 = inlined_call_operand.vmem [shape: f32[1,128], index: 2, kind: input, shape index: {}]
  %s3 = inlined_call_operand.vmem [shape: f32[1,128], index: 3, kind: input, shape index: {}]
  %s4 = inlined_call_operand.vmem [shape: f32[1,128], index: 4, kind: input, shape index: {}]
  %s5 = inlined_call_operand.vmem [shape: f32[32,128], index: 5, kind: output, shape index: {}]
  %s6 = sld [smem:[#allocation0]]
  $region30: #{generator_forward.4} parent=0
    _
  %s8 = ssub.s32 1, %s6
  %s9 = scalar_select 0, %s8, %s6
  // Predicated region
  $region2: #{generator_forward.4} parent=0 // pred_check
    _
  $region3: #{generator_forward.4} parent=0 // pred_check_branch
    %11 = sbr.rel (0) target = $region5
  $region4: #{generator_forward.4} parent=0 // pred_region
    _
  $region5: #{generator_forward.4} parent=0 // pred_fallthru
    _
  // Predicated region
  $region6: #{generator_forward.4} parent=0 // pred_check
    _
  $region7: #{generator_forward.4} parent=0 // pred_check_branch
    %13 = sbr.rel (0) target = $region9
  $region8: #{generator_forward.4} parent=0 // pred_region
    _
  $region9: #{generator_forward.4} parent=0 // pred_fallthru
    _
  // Predicated region
  $region10: #{generator_forward.4} parent=0 // pred_check
    _
  $region11: #{generator_forward.4} parent=0 // pred_check_branch
    %15 = sbr.rel (0) target = $region13
  $region12: #{generator_forward.4} parent=0 // pred_region
    _
  $region13: #{generator_forward.4} parent=0 // pred_fallthru
    _
  // Predicated region
  $region14: #{generator_forward.4} parent=0 // pred_check
    _
  $region15: #{generator_forward.4} parent=0 // pred_check_branch
    %17 = sbr.rel (0) target = $region17
  $region16: #{generator_forward.4} parent=0 // pred_region
    _
  $region17: #{generator_forward.4} parent=0 // pred_fallthru
    _
  // Predicated region
  $region18: #{generator_forward.4} parent=0 // pred_check
    _
  $region19: #{generator_forward.4} parent=0 // pred_check_branch
    %19 = sbr.rel (0) target = $region21
  $region20: #{generator_forward.4} parent=0 // pred_region
    _
  $region21: #{generator_forward.4} parent=0 // pred_fallthru
    _
  %v20 = vld [vmem:[%s0] sm:$0xff]
  %v21 = vld [vmem:[%s0 + $0x8] sm:$0xff]
  %v22 = vld [vmem:[%s0 + $0x10] sm:$0xff]
  %v23 = vld [vmem:[%s0 + $0x18] sm:$0xff]
  %v24 = vld [vmem:[%s1] sm:$0xff]
  %v25 = vld [vmem:[%s1 + $0x8] sm:$0xff]
  %v26 = vld [vmem:[%s1 + $0x10] sm:$0xff]
  %v27 = vld [vmem:[%s1 + $0x18] sm:$0xff]
  %v28 = vld [vmem:[%s1 + $0x20] sm:$0xff]
  %v29 = vld [vmem:[%s1 + $0x28] sm:$0xff]
  %v30 = vld [vmem:[%s1 + $0x30] sm:$0xff]
  %v31 = vld [vmem:[%s1 + $0x38] sm:$0xff]
  %v32 = vld [vmem:[%s1 + $0x40] sm:$0xff]
  %v33 = vld [vmem:[%s1 + $0x48] sm:$0xff]
  %v34 = vld [vmem:[%s1 + $0x50] sm:$0xff]
  %v35 = vld [vmem:[%s1 + $0x58] sm:$0xff]
  %v36 = vld [vmem:[%s1 + $0x60] sm:$0xff]
  %v37 = vld [vmem:[%s1 + $0x68] sm:$0xff]
  %v38 = vld [vmem:[%s1 + $0x70] sm:$0xff]
  %v39 = vld [vmem:[%s1 + $0x78] sm:$0xff]
  %v40 = vld [vmem:[%s2] sm:$0x1]
  %v42 = vlaneseq
  %v43 = vshrl.u32 %v42, 7
  %v44 = vsub.s32 0, %v43
  %v45 = vrot.slane %v40, %v44
  %47 = vmatprep.subr.mxu0 0.0
  %48 = vmatpush1.msra.mxu0 %v24
  %49 = vmatprep.subr.mxu0 0.0
  %50 = vmatpush1.msra.mxu0 %v25
  %51 = vmatprep.subr.mxu0 0.0
  %52 = vmatpush1.msra.mxu0 %v26
  %53 = vmatprep.subr.mxu0 0.0
  %54 = vmatpush1.msra.mxu0 %v27
  %55 = vmatprep.subr.mxu0 0.0
  %56 = vmatpush1.msra.mxu0 %v28
  %57 = vmatprep.subr.mxu0 0.0
  %58 = vmatpush1.msra.mxu0 %v29
  %59 = vmatprep.subr.mxu0 0.0
  %60 = vmatpush1.msra.mxu0 %v30
  %61 = vmatprep.subr.mxu0 0.0
  %62 = vmatpush1.msra.mxu0 %v31
  %63 = vmatprep.subr.mxu0 0.0
  %64 = vmatpush1.msra.mxu0 %v32
  %65 = vmatprep.subr.mxu0 0.0
  %66 = vmatpush1.msra.mxu0 %v33
  %67 = vmatprep.subr.mxu0 0.0
  %68 = vmatpush1.msra.mxu0 %v34
  %69 = vmatprep.subr.mxu0 0.0
  %70 = vmatpush1.msra.mxu0 %v35
  %71 = vmatprep.subr.mxu0 0.0
  %72 = vmatpush1.msra.mxu0 %v36
  %73 = vmatprep.subr.mxu0 0.0
  %74 = vmatpush1.msra.mxu0 %v37
  %75 = vmatprep.subr.mxu0 0.0
  %76 = vmatpush1.msra.mxu0 %v38
  %77 = vmatprep.subr.mxu0 0.0
  %78 = vmatpush1.msra.mxu0 %v39
  %79 = vmatprep.subr.mxu0 0.0
  %80 = vmatpush1.msra.mxu0 0.0
  %81 = vmatprep.subr.mxu0 0.0
  %82 = vmatpush1.msra.mxu0 0.0
  %83 = vmatprep.subr.mxu0 0.0
  %84 = vmatpush1.msra.mxu0 0.0
  %85 = vmatprep.subr.mxu0 0.0
  %86 = vmatpush1.msra.mxu0 0.0
  %87 = vmatprep.subr.mxu0 0.0
  %88 = vmatpush1.msra.mxu0 0.0
  %89 = vmatprep.subr.mxu0 0.0
  %90 = vmatpush1.msra.mxu0 0.0
  %91 = vmatprep.subr.mxu0 0.0
  %92 = vmatpush1.msra.mxu0 0.0
  %93 = vmatprep.subr.mxu0 0.0
  %94 = vmatpush1.msra.mxu0 0.0
  %95 = vmatprep.subr.mxu0 0.0
  %96 = vmatpush1.msra.mxu0 0.0
  %97 = vmatprep.subr.mxu0 0.0
  %98 = vmatpush1.msra.mxu0 0.0
  %99 = vmatprep.subr.mxu0 0.0
  %100 = vmatpush1.msra.mxu0 0.0
  %101 = vmatprep.subr.mxu0 0.0
  %102 = vmatpush1.msra.mxu0 0.0
  %103 = vmatprep.subr.mxu0 0.0
  %104 = vmatpush1.msra.mxu0 0.0
  %105 = vmatprep.subr.mxu0 0.0
  %106 = vmatpush1.msra.mxu0 0.0
  %107 = vmatprep.subr.mxu0 0.0
  %108 = vmatpush1.msra.mxu0 0.0
  %109 = vmatprep.subr.mxu0 0.0
  %110 = vmatpush1.msra.mxu0 0.0
  %111 = vmatprep.mubr.f32.mxu0 0.0
  %112 = vmatmul.mubr.f32.gmra.mrb[0].mxu0 %v20
  %v113 = vpop.f32.mrb[0].mxu0
  %v114 = vadd.f32 %v45, %v113
  %v115 = vpop.f32.mrb[0].mxu0
  %116 = vmatprep.mubr.f32.mxu0 0.0
  %117 = vmatmul.mubr.f32.gmra.mrb[0].mxu0 %v21
  %v118 = vpop.f32.mrb[0].mxu0
  %v119 = vadd.f32 %v45, %v118
  %v120 = vpop.f32.mrb[0].mxu0
  %121 = vmatprep.mubr.f32.mxu0 0.0
  %122 = vmatmul.mubr.f32.gmra.mrb[0].mxu0 %v22
  %v123 = vpop.f32.mrb[0].mxu0
  %v124 = vadd.f32 %v45, %v123
  %v125 = vpop.f32.mrb[0].mxu0
  %126 = vmatprep.mubr.f32.mxu0 0.0
  %127 = vmatmul.mubr.f32.gmra.mrb[0].mxu0 %v23
  %v128 = vpop.f32.mrb[0].mxu0
  %v129 = vadd.f32 %v45, %v128
  %v130 = vpop.f32.mrb[0].mxu0
  %131 = vdwg.mxu0
  %v132 = vadd.f32 %v114, %v119
  %v133 = vadd.f32 %v132, %v124
  %v134 = vadd.f32 %v133, %v129
  %v135 = vrot.slane %v134, 4
  %v136 = vadd.f32 %v134, %v135
  %v137 = vrot.slane %v136, 2
  %v138 = vadd.f32 %v136, %v137
  %v139 = vrot.slane %v138, 1
  %v140 = vadd.f32 %v138, %v139
  %v141 = vrcp.pop 32.0
  %v142 = vmul.f32 %v140, %v141
  %v143 = vsub.f32 %v114, %v142
  %v144 = vsub.f32 %v119, %v142
  %v145 = vsub.f32 %v124, %v142
  %v146 = vsub.f32 %v129, %v142
  %v147 = vmul.f32 %v143, %v143
  %v148 = vmul.f32 %v144, %v144
  %v149 = vmul.f32 %v145, %v145
  %v150 = vmul.f32 %v146, %v146
  %v151 = vadd.f32 %v147, %v148
  %v152 = vadd.f32 %v151, %v149
  %v153 = vadd.f32 %v152, %v150
  %v154 = vrot.slane %v153, 4
  %v155 = vadd.f32 %v153, %v154
  %v156 = vrot.slane %v155, 2
  %v157 = vadd.f32 %v155, %v156
  %v158 = vrot.slane %v157, 1
  %v159 = vadd.f32 %v157, %v158
  %v160 = vmul.f32 %v159, %v141
  %v161 = vadd.f32 %v160, 1e-05
  %v162 = vrsqrt.pop %v161
  %v163 = vmul.f32 %v143, %v162
  %v164 = vmul.f32 %v144, %v162
  %v165 = vmul.f32 %v145, %v162
  %v166 = vmul.f32 %v146, %v162
  %v167 = vld [vmem:[%s3] sm:$0x1]
  %v169 = vlaneseq
  %v170 = vshrl.u32 %v169, 7
  %v171 = vsub.s32 0, %v170
  %v172 = vrot.slane %v167, %v171
  %v174 = vmul.f32 %v163, %v172
  %v175 = vmul.f32 %v164, %v172
  %v176 = vmul.f32 %v165, %v172
  %v177 = vmul.f32 %v166, %v172
  %v178 = vld [vmem:[%s4] sm:$0x1]
  %v180 = vlaneseq
  %v181 = vshrl.u32 %v180, 7
  %v182 = vsub.s32 0, %v181
  %v183 = vrot.slane %v178, %v182
  %v185 = vadd.f32 %v174, %v183
  %v186 = vadd.f32 %v175, %v183
  %v187 = vadd.f32 %v176, %v183
  %v188 = vadd.f32 %v177, %v183
  %v189 = vmax.f32 %v185, 0.0
  %v190 = vmax.f32 %v186, 0.0
  %v191 = vmax.f32 %v187, 0.0
  %v192 = vmax.f32 %v188, 0.0
  %193 = vst [vmem:[%s5] sm:$0xff] %v189
  %194 = vst [vmem:[%s5 + $0x8] sm:$0xff] %v190
  %195 = vst [vmem:[%s5 + $0x10] sm:$0xff] %v191
  %196 = vst [vmem:[%s5 + $0x18] sm:$0xff] %v192
  // Predicated region
  $region22: #{generator_forward.4} parent=0 // pred_check
    _
  $region23: #{generator_forward.4} parent=0 // pred_check_branch
    %198 = sbr.rel (0) target = $region25
  $region24: #{generator_forward.4} parent=0 // pred_region
    _
  $region25: #{generator_forward.4} parent=0 // pred_fallthru
    _
  // Predicated region
  $region26: #{generator_forward.4} parent=0 // pred_check
    _
  $region27: #{generator_forward.4} parent=0 // pred_check_branch
    %200 = sbr.rel (0) target = $region29
  $region28: #{generator_forward.4} parent=0 // pred_region
    _
  $region29: #{generator_forward.4} parent=0 // pred_fallthru
    _

// kernel: generator_forward.5
$region0: #{generator_forward.5}
  #allocation0 [shape = 'u32[]', space=smem, size = 0x4, offset = 0x4, fixed_abs, tag = 'smem constant byte address 0x4 - core index']
  #allocation1 [shape = 'u32[144,128]{1,0:T(1,128)}', space=vmem, size = 0x12000, scoped, tag = 'internal scratch']
  %s0 = inlined_call_operand.vmem [shape: f32[98,144], index: 0, kind: input, shape index: {}]
  %s1 = inlined_call_operand.vmem [shape: f32[144,128], index: 1, kind: input, shape index: {}]
  %s2 = inlined_call_operand.vmem [shape: f32[1,128], index: 2, kind: input, shape index: {}]
  %s3 = inlined_call_operand.vmem [shape: f32[1,128], index: 3, kind: input, shape index: {}]
  %s4 = inlined_call_operand.vmem [shape: f32[1,128], index: 4, kind: input, shape index: {}]
  %s5 = inlined_call_operand.vmem [shape: f32[98,128], index: 5, kind: output, shape index: {}]
  %s6 = sld [smem:[#allocation0]]
  $region30: #{generator_forward.5} parent=0
    _
  %s8 = ssub.s32 1, %s6
  %s9 = scalar_select 0, %s8, %s6
  // Predicated region
  $region2: #{generator_forward.5} parent=0 // pred_check
    _
  $region3: #{generator_forward.5} parent=0 // pred_check_branch
    %11 = sbr.rel (0) target = $region5
  $region4: #{generator_forward.5} parent=0 // pred_region
    _
  $region5: #{generator_forward.5} parent=0 // pred_fallthru
    _
  // Predicated region
  $region6: #{generator_forward.5} parent=0 // pred_check
    _
  $region7: #{generator_forward.5} parent=0 // pred_check_branch
    %13 = sbr.rel (0) target = $region9
  $region8: #{generator_forward.5} parent=0 // pred_region
    _
  $region9: #{generator_forward.5} parent=0 // pred_fallthru
    _
  // Predicated region
  $region10: #{generator_forward.5} parent=0 // pred_check
    _
  $region11: #{generator_forward.5} parent=0 // pred_check_branch
    %15 = sbr.rel (0) target = $region13
  $region12: #{generator_forward.5} parent=0 // pred_region
    _
  $region13: #{generator_forward.5} parent=0 // pred_fallthru
    _
  // Predicated region
  $region14: #{generator_forward.5} parent=0 // pred_check
    _
  $region15: #{generator_forward.5} parent=0 // pred_check_branch
    %17 = sbr.rel (0) target = $region17
  $region16: #{generator_forward.5} parent=0 // pred_region
    _
  $region17: #{generator_forward.5} parent=0 // pred_fallthru
    _
  // Predicated region
  $region18: #{generator_forward.5} parent=0 // pred_check
    _
  $region19: #{generator_forward.5} parent=0 // pred_check_branch
    %19 = sbr.rel (0) target = $region21
  $region20: #{generator_forward.5} parent=0 // pred_region
    _
  $region21: #{generator_forward.5} parent=0 // pred_fallthru
    _
  %v20 = vld [vmem:[%s0] sm:$0xff]
  %v21 = vld [vmem:[%s0 + $0x8] sm:$0xff]
  %v22 = vld [vmem:[%s0 + $0x10] sm:$0xff]
  %v23 = vld [vmem:[%s0 + $0x18] sm:$0xff]
  %v24 = vld [vmem:[%s0 + $0x20] sm:$0xff]
  %v25 = vld [vmem:[%s0 + $0x28] sm:$0xff]
  %v26 = vld [vmem:[%s0 + $0x30] sm:$0xff]
  %v27 = vld [vmem:[%s0 + $0x38] sm:$0xff]
  %v28 = vld [vmem:[%s0 + $0x40] sm:$0xff]
  %v29 = vld [vmem:[%s0 + $0x48] sm:$0xff]
  %v30 = vld [vmem:[%s0 + $0x50] sm:$0xff]
  %v31 = vld [vmem:[%s0 + $0x58] sm:$0xff]
  %v32 = vld [vmem:[%s0 + $0x60] sm:$0xff]
  %v33 = vld [vmem:[%s0 + $0x68] sm:$0xff]
  %v34 = vld [vmem:[%s0 + $0x70] sm:$0xff]
  %v35 = vld [vmem:[%s0 + $0x78] sm:$0xff]
  %v36 = vld [vmem:[%s0 + $0x80] sm:$0xff]
  %v37 = vld [vmem:[%s0 + $0x88] sm:$0xff]
  %v38 = vld [vmem:[%s0 + $0x90] sm:$0xff]
  %v39 = vld [vmem:[%s0 + $0x98] sm:$0xff]
  %v40 = vld [vmem:[%s0 + $0xa0] sm:$0xff]
  %v41 = vld [vmem:[%s0 + $0xa8] sm:$0xff]
  %v42 = vld [vmem:[%s0 + $0xb0] sm:$0xff]
  %v43 = vld [vmem:[%s0 + $0xb8] sm:$0xff]
  %v44 = vld [vmem:[%s0 + $0xc0] sm:$0x3]
  %v45 = vld [vmem:[%s0 + $0xc8] sm:$0x3]
  %v46 = vld [vmem:[%s1] sm:$0xff]
  %v47 = vld [vmem:[%s1 + $0x8] sm:$0xff]
  %v48 = vld [vmem:[%s1 + $0x10] sm:$0xff]
  %v49 = vld [vmem:[%s1 + $0x18] sm:$0xff]
  %v50 = vld [vmem:[%s1 + $0x20] sm:$0xff]
  %v51 = vld [vmem:[%s1 + $0x28] sm:$0xff]
  %v52 = vld [vmem:[%s1 + $0x30] sm:$0xff]
  %v53 = vld [vmem:[%s1 + $0x38] sm:$0xff]
  %v54 = vld [vmem:[%s1 + $0x40] sm:$0xff]
  %v55 = vld [vmem:[%s1 + $0x48] sm:$0xff]
  %v56 = vld [vmem:[%s1 + $0x50] sm:$0xff]
  %v57 = vld [vmem:[%s1 + $0x58] sm:$0xff]
  %v58 = vld [vmem:[%s1 + $0x60] sm:$0xff]
  %v59 = vld [vmem:[%s1 + $0x68] sm:$0xff]
  %v60 = vld [vmem:[%s1 + $0x70] sm:$0xff]
  %v61 = vld [vmem:[%s1 + $0x78] sm:$0xff]
  %v62 = vld [vmem:[%s1 + $0x80] sm:$0xff]
  %v63 = vld [vmem:[%s1 + $0x88] sm:$0xff]
  %v64 = vld [vmem:[%s2] sm:$0x1]
  %v66 = vlaneseq
  %v67 = vshrl.u32 %v66, 7
  %v68 = vsub.s32 0, %v67
  %v69 = vrot.slane %v64, %v68
  %vm71 = vcmask 130048
  %v73 = vsel %vm71, %v21, 0
  %v76 = vsel %vm71, %v23, 0
  %v79 = vsel %vm71, %v25, 0
  %v82 = vsel %vm71, %v27, 0
  %v85 = vsel %vm71, %v29, 0
  %v88 = vsel %vm71, %v31, 0
  %v91 = vsel %vm71, %v33, 0
  %v94 = vsel %vm71, %v35, 0
  %v97 = vsel %vm71, %v37, 0
  %v100 = vsel %vm71, %v39, 0
  %v103 = vsel %vm71, %v41, 0
  %v106 = vsel %vm71, %v43, 0
  %v109 = vsel %vm71, %v45, 0
  %111 = vmatprep.subr.mxu0 0.0
  %112 = vmatpush1.msra.mxu0 %v46
  %113 = vmatprep.subr.mxu0 0.0
  %114 = vmatpush1.msra.mxu0 %v47
  %115 = vmatprep.subr.mxu0 0.0
  %116 = vmatpush1.msra.mxu0 %v48
  %117 = vmatprep.subr.mxu0 0.0
  %118 = vmatpush1.msra.mxu0 %v49
  %119 = vmatprep.subr.mxu0 0.0
  %120 = vmatpush1.msra.mxu0 %v50
  %121 = vmatprep.subr.mxu0 0.0
  %122 = vmatpush1.msra.mxu0 %v51
  %123 = vmatprep.subr.mxu0 0.0
  %124 = vmatpush1.msra.mxu0 %v52
  %125 = vmatprep.subr.mxu0 0.0
  %126 = vmatpush1.msra.mxu0 %v53
  %127 = vmatprep.subr.mxu0 0.0
  %128 = vmatpush1.msra.mxu0 %v54
  %129 = vmatprep.subr.mxu0 0.0
  %130 = vmatpush1.msra.mxu0 %v55
  %131 = vmatprep.subr.mxu0 0.0
  %132 = vmatpush1.msra.mxu0 %v56
  %133 = vmatprep.subr.mxu0 0.0
  %134 = vmatpush1.msra.mxu0 %v57
  %135 = vmatprep.subr.mxu0 0.0
  %136 = vmatpush1.msra.mxu0 %v58
  %137 = vmatprep.subr.mxu0 0.0
  %138 = vmatpush1.msra.mxu0 %v59
  %139 = vmatprep.subr.mxu0 0.0
  %140 = vmatpush1.msra.mxu0 %v60
  %141 = vmatprep.subr.mxu0 0.0
  %142 = vmatpush1.msra.mxu0 %v61
  %143 = vmatprep.subr.mxu0 0.0
  %144 = vmatpush1.msra.mxu0 %v62
  %145 = vmatprep.subr.mxu0 0.0
  %146 = vmatpush1.msra.mxu0 %v63
  %147 = vmatprep.subr.mxu0 0.0
  %148 = vmatpush1.msra.mxu0 0.0
  %149 = vmatprep.subr.mxu0 0.0
  %150 = vmatpush1.msra.mxu0 0.0
  %151 = vmatprep.subr.mxu0 0.0
  %152 = vmatpush1.msra.mxu0 0.0
  %153 = vmatprep.subr.mxu0 0.0
  %154 = vmatpush1.msra.mxu0 0.0
  %155 = vmatprep.subr.mxu0 0.0
  %156 = vmatpush1.msra.mxu0 0.0
  %157 = vmatprep.subr.mxu0 0.0
  %158 = vmatpush1.msra.mxu0 0.0
  %159 = vmatprep.subr.mxu0 0.0
  %160 = vmatpush1.msra.mxu0 0.0
  %161 = vmatprep.subr.mxu0 0.0
  %162 = vmatpush1.msra.mxu0 0.0
  %163 = vmatprep.subr.mxu0 0.0
  %164 = vmatpush1.msra.mxu0 0.0
  %165 = vmatprep.subr.mxu0 0.0
  %166 = vmatpush1.msra.mxu0 0.0
  %167 = vmatprep.subr.mxu0 0.0
  %168 = vmatpush1.msra.mxu0 0.0
  %169 = vmatprep.subr.mxu0 0.0
  %170 = vmatpush1.msra.mxu0 0.0
  %171 = vmatprep.subr.mxu0 0.0
  %172 = vmatpush1.msra.mxu0 0.0
  %173 = vmatprep.subr.mxu0 0.0
  %174 = vmatpush1.msra.mxu0 0.0
  %175 = vmatprep.mubr.f32.mxu0 %v73
  %176 = vmatmul.mubr.f32.gmra.mrb[0].mxu0 %v20
  %v177 = vpop.f32.mrb[0].mxu0
  %v178 = vadd.f32 %v69, %v177
  %v179 = vpop.f32.mrb[0].mxu0
  %180 = vmatprep.mubr.f32.mxu0 %v76
  %181 = vmatmul.mubr.f32.gmra.mrb[0].mxu0 %v22
  %v182 = vpop.f32.mrb[0].mxu0
  %v183 = vadd.f32 %v69, %v182
  %v184 = vpop.f32.mrb[0].mxu0
  %185 = vmatprep.mubr.f32.mxu0 %v79
  %186 = vmatmul.mubr.f32.gmra.mrb[0].mxu0 %v24
  %v187 = vpop.f32.mrb[0].mxu0
  %v188 = vadd.f32 %v69, %v187
  %v189 = vpop.f32.mrb[0].mxu0
  %190 = vmatprep.mubr.f32.mxu0 %v82
  %191 = vmatmul.mubr.f32.gmra.mrb[0].mxu0 %v26
  %v192 = vpop.f32.mrb[0].mxu0
  %v193 = vadd.f32 %v69, %v192
  %v194 = vpop.f32.mrb[0].mxu0
  %195 = vmatprep.mubr.f32.mxu0 %v85
  %196 = vmatmul.mubr.f32.gmra.mrb[0].mxu0 %v28
  %v197 = vpop.f32.mrb[0].mxu0
  %v198 = vadd.f32 %v69, %v197
  %v199 = vpop.f32.mrb[0].mxu0
  %200 = vmatprep.mubr.f32.mxu0 %v88
  %201 = vmatmul.mubr.f32.gmra.mrb[0].mxu0 %v30
  %v202 = vpop.f32.mrb[0].mxu0
  %v203 = vadd.f32 %v69, %v202
  %v204 = vpop.f32.mrb[0].mxu0
  %205 = vmatprep.mubr.f32.mxu0 %v91
  %206 = vmatmul.mubr.f32.gmra.mrb[0].mxu0 %v32
  %v207 = vpop.f32.mrb[0].mxu0
  %v208 = vadd.f32 %v69, %v207
  %v209 = vpop.f32.mrb[0].mxu0
  %210 = vmatprep.mubr.f32.mxu0 %v94
  %211 = vmatmul.mubr.f32.gmra.mrb[0].mxu0 %v34
  %v212 = vpop.f32.mrb[0].mxu0
  %v213 = vadd.f32 %v69, %v212
  %v214 = vpop.f32.mrb[0].mxu0
  %215 = vmatprep.mubr.f32.mxu0 %v97
  %216 = vmatmul.mubr.f32.gmra.mrb[0].mxu0 %v36
  %v217 = vpop.f32.mrb[0].mxu0
  %v218 = vadd.f32 %v69, %v217
  %v219 = vpop.f32.mrb[0].mxu0
  %220 = vmatprep.mubr.f32.mxu0 %v100
  %221 = vmatmul.mubr.f32.gmra.mrb[0].mxu0 %v38
  %v222 = vpop.f32.mrb[0].mxu0
  %v223 = vadd.f32 %v69, %v222
  %v224 = vpop.f32.mrb[0].mxu0
  %225 = vmatprep.mubr.f32.mxu0 %v103
  %226 = vmatmul.mubr.f32.gmra.mrb[0].mxu0 %v40
  %v227 = vpop.f32.mrb[0].mxu0
  %v228 = vadd.f32 %v69, %v227
  %v229 = vpop.f32.mrb[0].mxu0
  %230 = vmatprep.mubr.f32.mxu0 %v106
  %231 = vmatmul.mubr.f32.gmra.mrb[0].mxu0 %v42
  %v232 = vpop.f32.mrb[0].mxu0
  %v233 = vadd.f32 %v69, %v232
  %v234 = vpop.f32.mrb[0].mxu0
  %235 = vmatprep.mubr.f32.mxu0 %v109
  %236 = vmatmul.mubr.f32.gmra.mrb[0].mxu0 %v44
  %v237 = vpop.f32.mrb[0].mxu0
  %v238 = vadd.f32 %v69, %v237
  %v239 = vpop.f32.mrb[0].mxu0
  %240 = vdwg.mxu0
  %v241 = vadd.f32 %v178, %v183
  %v242 = vadd.f32 %v241, %v188
  %v243 = vadd.f32 %v242, %v193
  %v244 = vadd.f32 %v243, %v198
  %v245 = vadd.f32 %v244, %v203
  %v246 = vadd.f32 %v245, %v208
  %v247 = vadd.f32 %v246, %v213
  %v248 = vadd.f32 %v247, %v218
  %v249 = vadd.f32 %v248, %v223
  %v250 = vadd.f32 %v249, %v228
  %v251 = vadd.f32 %v250, %v233
  %vm252 = vcmask 1041408
  %v253 = vsel %vm252, %v238, 0.0
  %v254 = vadd.f32 %v251, %v253
  %v255 = vrot.slane %v254, 4
  %v256 = vadd.f32 %v254, %v255
  %v257 = vrot.slane %v256, 2
  %v258 = vadd.f32 %v256, %v257
  %v259 = vrot.slane %v258, 1
  %v260 = vadd.f32 %v258, %v259
  %v261 = vrcp.pop 98.0
  %v262 = vmul.f32 %v260, %v261
  %v263 = vsub.f32 %v178, %v262
  %v264 = vsub.f32 %v183, %v262
  %v265 = vsub.f32 %v188, %v262
  %v266 = vsub.f32 %v193, %v262
  %v267 = vsub.f32 %v198, %v262
  %v268 = vsub.f32 %v203, %v262
  %v269 = vsub.f32 %v208, %v262
  %v270 = vsub.f32 %v213, %v262
  %v271 = vsub.f32 %v218, %v262
  %v272 = vsub.f32 %v223, %v262
  %v273 = vsub.f32 %v228, %v262
  %v274 = vsub.f32 %v233, %v262
  %v275 = vsub.f32 %v238, %v262
  %v276 = vmul.f32 %v263, %v263
  %v277 = vmul.f32 %v264, %v264
  %v278 = vmul.f32 %v265, %v265
  %v279 = vmul.f32 %v266, %v266
  %v280 = vmul.f32 %v267, %v267
  %v281 = vmul.f32 %v268, %v268
  %v282 = vmul.f32 %v269, %v269
  %v283 = vmul.f32 %v270, %v270
  %v284 = vmul.f32 %v271, %v271
  %v285 = vmul.f32 %v272, %v272
  %v286 = vmul.f32 %v273, %v273
  %v287 = vmul.f32 %v274, %v274
  %v288 = vmul.f32 %v275, %v275
  %v289 = vadd.f32 %v276, %v277
  %v290 = vadd.f32 %v289, %v278
  %v291 = vadd.f32 %v290, %v279
  %v292 = vadd.f32 %v291, %v280
  %v293 = vadd.f32 %v292, %v281
  %v294 = vadd.f32 %v293, %v282
  %v295 = vadd.f32 %v294, %v283
  %v296 = vadd.f32 %v295, %v284
  %v297 = vadd.f32 %v296, %v285
  %v298 = vadd.f32 %v297, %v286
  %v299 = vadd.f32 %v298, %v287
  %v300 = vsel %vm252, %v288, 0.0
  %v301 = vadd.f32 %v299, %v300
  %v302 = vrot.slane %v301, 4
  %v303 = vadd.f32 %v301, %v302
  %v304 = vrot.slane %v303, 2
  %v305 = vadd.f32 %v303, %v304
  %v306 = vrot.slane %v305, 1
  %v307 = vadd.f32 %v305, %v306
  %v308 = vmul.f32 %v307, %v261
  %v309 = vadd.f32 %v308, 1e-05
  %v310 = vrsqrt.pop %v309
  %v311 = vmul.f32 %v263, %v310
  %v312 = vmul.f32 %v264, %v310
  %v313 = vmul.f32 %v265, %v310
  %v314 = vmul.f32 %v266, %v310
  %v315 = vmul.f32 %v267, %v310
  %v316 = vmul.f32 %v268, %v310
  %v317 = vmul.f32 %v269, %v310
  %v318 = vmul.f32 %v270, %v310
  %v319 = vmul.f32 %v271, %v310
  %v320 = vmul.f32 %v272, %v310
  %v321 = vmul.f32 %v273, %v310
  %v322 = vmul.f32 %v274, %v310
  %v323 = vmul.f32 %v275, %v310
  %v324 = vld [vmem:[%s3] sm:$0x1]
  %v326 = vlaneseq
  %v327 = vshrl.u32 %v326, 7
  %v328 = vsub.s32 0, %v327
  %v329 = vrot.slane %v324, %v328
  %v331 = vmul.f32 %v311, %v329
  %v332 = vmul.f32 %v312, %v329
  %v333 = vmul.f32 %v313, %v329
  %v334 = vmul.f32 %v314, %v329
  %v335 = vmul.f32 %v315, %v329
  %v336 = vmul.f32 %v316, %v329
  %v337 = vmul.f32 %v317, %v329
  %v338 = vmul.f32 %v318, %v329
  %v339 = vmul.f32 %v319, %v329
  %v340 = vmul.f32 %v320, %v329
  %v341 = vmul.f32 %v321, %v329
  %v342 = vmul.f32 %v322, %v329
  %v343 = vmul.f32 %v323, %v329
  %v344 = vld [vmem:[%s4] sm:$0x1]
  %v346 = vlaneseq
  %v347 = vshrl.u32 %v346, 7
  %v348 = vsub.s32 0, %v347
  %v349 = vrot.slane %v344, %v348
  %v351 = vadd.f32 %v331, %v349
  %v352 = vadd.f32 %v332, %v349
  %v353 = vadd.f32 %v333, %v349
  %v354 = vadd.f32 %v334, %v349
  %v355 = vadd.f32 %v335, %v349
  %v356 = vadd.f32 %v336, %v349
  %v357 = vadd.f32 %v337, %v349
  %v358 = vadd.f32 %v338, %v349
  %v359 = vadd.f32 %v339, %v349
  %v360 = vadd.f32 %v340, %v349
  %v361 = vadd.f32 %v341, %v349
  %v362 = vadd.f32 %v342, %v349
  %v363 = vadd.f32 %v343, %v349
  %v364 = vmax.f32 %v351, 0.0
  %v365 = vmax.f32 %v352, 0.0
  %v366 = vmax.f32 %v353, 0.0
  %v367 = vmax.f32 %v354, 0.0
  %v368 = vmax.f32 %v355, 0.0
  %v369 = vmax.f32 %v356, 0.0
  %v370 = vmax.f32 %v357, 0.0
  %v371 = vmax.f32 %v358, 0.0
  %v372 = vmax.f32 %v359, 0.0
  %v373 = vmax.f32 %v360, 0.0
  %v374 = vmax.f32 %v361, 0.0
  %v375 = vmax.f32 %v362, 0.0
  %v376 = vmax.f32 %v363, 0.0
  %377 = vst [vmem:[%s5] sm:$0xff] %v364
  %378 = vst [vmem:[%s5 + $0x8] sm:$0xff] %v365
  %379 = vst [vmem:[%s5 + $0x10] sm:$0xff] %v366
  %380 = vst [vmem:[%s5 + $0x18] sm:$0xff] %v367
  %381 = vst [vmem:[%s5 + $0x20] sm:$0xff] %v368
  %382 = vst [vmem:[%s5 + $0x28] sm:$0xff] %v369
  %383 = vst [vmem:[%s5 + $0x30] sm:$0xff] %v370
  %384 = vst [vmem:[%s5 + $0x38] sm:$0xff] %v371
  %385 = vst [vmem:[%s5 + $0x40] sm:$0xff] %v372
  %386 = vst [vmem:[%s5 + $0x48] sm:$0xff] %v373
  %387 = vst [vmem:[%s5 + $0x50] sm:$0xff] %v374
  %388 = vst [vmem:[%s5 + $0x58] sm:$0xff] %v375
  %389 = vst [vmem:[%s5 + $0x60] sm:$0x3] %v376
  // Predicated region
  $region22: #{generator_forward.5} parent=0 // pred_check
    _
  $region23: #{generator_forward.5} parent=0 // pred_check_branch
    %391 = sbr.rel (0) target = $region25
  $region24: #{generator_forward.5} parent=0 // pred_region
    _
  $region25: #{generator_forward.5} parent=0 // pred_fallthru
    _
  // Predicated region
  $region26: #{generator_forward.5} parent=0 // pred_check
    _
  $region27: #{generator_forward.5} parent=0 // pred_check_branch
    %393 = sbr.rel (0) target = $region29
  $region28: #{generator_forward.5} parent=0 // pred_region
    _
  $region29: #{generator_forward.5} parent=0 // pred_fallthru
    _

// kernel: generator_forward.6
$region0: #{generator_forward.6}
  #allocation0 [shape = 'u32[]', space=smem, size = 0x4, offset = 0x4, fixed_abs, tag = 'smem constant byte address 0x4 - core index']
  #allocation1 [shape = 'u32[144,128]{1,0:T(1,128)}', space=vmem, size = 0x12000, scoped, tag = 'internal scratch']
  %s0 = inlined_call_operand.vmem [shape: f32[392,128], index: 0, kind: input, shape index: {}]
  %s1 = inlined_call_operand.vmem [shape: f32[128,128], index: 1, kind: input, shape index: {}]
  %s2 = inlined_call_operand.vmem [shape: f32[1,128], index: 2, kind: input, shape index: {}]
  %s3 = inlined_call_operand.vmem [shape: f32[1,128], index: 3, kind: input, shape index: {}]
  %s4 = inlined_call_operand.vmem [shape: f32[1,128], index: 4, kind: input, shape index: {}]
  %s5 = inlined_call_operand.vmem [shape: f32[392,128], index: 5, kind: output, shape index: {}]
  %s6 = sld [smem:[#allocation0]]
  $region30: #{generator_forward.6} parent=0
    _
  %s8 = ssub.s32 1, %s6
  %s9 = scalar_select 0, %s8, %s6
  // Predicated region
  $region2: #{generator_forward.6} parent=0 // pred_check
    _
  $region3: #{generator_forward.6} parent=0 // pred_check_branch
    %11 = sbr.rel (0) target = $region5
  $region4: #{generator_forward.6} parent=0 // pred_region
    _
  $region5: #{generator_forward.6} parent=0 // pred_fallthru
    _
  // Predicated region
  $region6: #{generator_forward.6} parent=0 // pred_check
    _
  $region7: #{generator_forward.6} parent=0 // pred_check_branch
    %13 = sbr.rel (0) target = $region9
  $region8: #{generator_forward.6} parent=0 // pred_region
    _
  $region9: #{generator_forward.6} parent=0 // pred_fallthru
    _
  // Predicated region
  $region10: #{generator_forward.6} parent=0 // pred_check
    _
  $region11: #{generator_forward.6} parent=0 // pred_check_branch
    %15 = sbr.rel (0) target = $region13
  $region12: #{generator_forward.6} parent=0 // pred_region
    _
  $region13: #{generator_forward.6} parent=0 // pred_fallthru
    _
  // Predicated region
  $region14: #{generator_forward.6} parent=0 // pred_check
    _
  $region15: #{generator_forward.6} parent=0 // pred_check_branch
    %17 = sbr.rel (0) target = $region17
  $region16: #{generator_forward.6} parent=0 // pred_region
    _
  $region17: #{generator_forward.6} parent=0 // pred_fallthru
    _
  // Predicated region
  $region18: #{generator_forward.6} parent=0 // pred_check
    _
  $region19: #{generator_forward.6} parent=0 // pred_check_branch
    %19 = sbr.rel (0) target = $region21
  $region20: #{generator_forward.6} parent=0 // pred_region
    _
  $region21: #{generator_forward.6} parent=0 // pred_fallthru
    _
  %v20 = vld [vmem:[%s0] sm:$0xff]
  %v21 = vld [vmem:[%s0 + $0x8] sm:$0xff]
  %v22 = vld [vmem:[%s0 + $0x10] sm:$0xff]
  %v23 = vld [vmem:[%s0 + $0x18] sm:$0xff]
  %v24 = vld [vmem:[%s0 + $0x20] sm:$0xff]
  %v25 = vld [vmem:[%s0 + $0x28] sm:$0xff]
  %v26 = vld [vmem:[%s0 + $0x30] sm:$0xff]
  %v27 = vld [vmem:[%s0 + $0x38] sm:$0xff]
  %v28 = vld [vmem:[%s0 + $0x40] sm:$0xff]
  %v29 = vld [vmem:[%s0 + $0x48] sm:$0xff]
  %v30 = vld [vmem:[%s0 + $0x50] sm:$0xff]
  %v31 = vld [vmem:[%s0 + $0x58] sm:$0xff]
  %v32 = vld [vmem:[%s0 + $0x60] sm:$0xff]
  %v33 = vld [vmem:[%s0 + $0x68] sm:$0xff]
  %v34 = vld [vmem:[%s0 + $0x70] sm:$0xff]
  %v35 = vld [vmem:[%s0 + $0x78] sm:$0xff]
  %v36 = vld [vmem:[%s0 + $0x80] sm:$0xff]
  %v37 = vld [vmem:[%s0 + $0x88] sm:$0xff]
  %v38 = vld [vmem:[%s0 + $0x90] sm:$0xff]
  %v39 = vld [vmem:[%s0 + $0x98] sm:$0xff]
  %v40 = vld [vmem:[%s0 + $0xa0] sm:$0xff]
  %v41 = vld [vmem:[%s0 + $0xa8] sm:$0xff]
  %v42 = vld [vmem:[%s0 + $0xb0] sm:$0xff]
  %v43 = vld [vmem:[%s0 + $0xb8] sm:$0xff]
  %v44 = vld [vmem:[%s0 + $0xc0] sm:$0xff]
  %v45 = vld [vmem:[%s0 + $0xc8] sm:$0xff]
  %v46 = vld [vmem:[%s0 + $0xd0] sm:$0xff]
  %v47 = vld [vmem:[%s0 + $0xd8] sm:$0xff]
  %v48 = vld [vmem:[%s0 + $0xe0] sm:$0xff]
  %v49 = vld [vmem:[%s0 + $0xe8] sm:$0xff]
  %v50 = vld [vmem:[%s0 + $0xf0] sm:$0xff]
  %v51 = vld [vmem:[%s0 + $0xf8] sm:$0xff]
  %v52 = vld [vmem:[%s0 + $0x100] sm:$0xff]
  %v53 = vld [vmem:[%s0 + $0x108] sm:$0xff]
  %v54 = vld [vmem:[%s0 + $0x110] sm:$0xff]
  %v55 = vld [vmem:[%s0 + $0x118] sm:$0xff]
  %v56 = vld [vmem:[%s0 + $0x120] sm:$0xff]
  %v57 = vld [vmem:[%s0 + $0x128] sm:$0xff]
  %v58 = vld [vmem:[%s0 + $0x130] sm:$0xff]
  %v59 = vld [vmem:[%s0 + $0x138] sm:$0xff]
  %v60 = vld [vmem:[%s0 + $0x140] sm:$0xff]
  %v61 = vld [vmem:[%s0 + $0x148] sm:$0xff]
  %v62 = vld [vmem:[%s0 + $0x150] sm:$0xff]
  %v63 = vld [vmem:[%s0 + $0x158] sm:$0xff]
  %v64 = vld [vmem:[%s0 + $0x160] sm:$0xff]
  %v65 = vld [vmem:[%s0 + $0x168] sm:$0xff]
  %v66 = vld [vmem:[%s0 + $0x170] sm:$0xff]
  %v67 = vld [vmem:[%s0 + $0x178] sm:$0xff]
  %v68 = vld [vmem:[%s0 + $0x180] sm:$0xff]
  %v69 = vld [vmem:[%s1] sm:$0xff]
  %v70 = vld [vmem:[%s1 + $0x8] sm:$0xff]
  %v71 = vld [vmem:[%s1 + $0x10] sm:$0xff]
  %v72 = vld [vmem:[%s1 + $0x18] sm:$0xff]
  %v73 = vld [vmem:[%s1 + $0x20] sm:$0xff]
  %v74 = vld [vmem:[%s1 + $0x28] sm:$0xff]
  %v75 = vld [vmem:[%s1 + $0x30] sm:$0xff]
  %v76 = vld [vmem:[%s1 + $0x38] sm:$0xff]
  %v77 = vld [vmem:[%s1 + $0x40] sm:$0xff]
  %v78 = vld [vmem:[%s1 + $0x48] sm:$0xff]
  %v79 = vld [vmem:[%s1 + $0x50] sm:$0xff]
  %v80 = vld [vmem:[%s1 + $0x58] sm:$0xff]
  %v81 = vld [vmem:[%s1 + $0x60] sm:$0xff]
  %v82 = vld [vmem:[%s1 + $0x68] sm:$0xff]
  %v83 = vld [vmem:[%s1 + $0x70] sm:$0xff]
  %v84 = vld [vmem:[%s1 + $0x78] sm:$0xff]
  %v85 = vld [vmem:[%s2] sm:$0x1]
  %v87 = vlaneseq
  %v88 = vshrl.u32 %v87, 7
  %v89 = vsub.s32 0, %v88
  %v90 = vrot.slane %v85, %v89
  %92 = vmatprep.subr.mxu0 0.0
  %93 = vmatpush1.msra.mxu0 %v69
  %94 = vmatprep.subr.mxu0 0.0
  %95 = vmatpush1.msra.mxu0 %v70
  %96 = vmatprep.subr.mxu0 0.0
  %97 = vmatpush1.msra.mxu0 %v71
  %98 = vmatprep.subr.mxu0 0.0
  %99 = vmatpush1.msra.mxu0 %v72
  %100 = vmatprep.subr.mxu0 0.0
  %101 = vmatpush1.msra.mxu0 %v73
  %102 = vmatprep.subr.mxu0 0.0
  %103 = vmatpush1.msra.mxu0 %v74
  %104 = vmatprep.subr.mxu0 0.0
  %105 = vmatpush1.msra.mxu0 %v75
  %106 = vmatprep.subr.mxu0 0.0
  %107 = vmatpush1.msra.mxu0 %v76
  %108 = vmatprep.subr.mxu0 0.0
  %109 = vmatpush1.msra.mxu0 %v77
  %110 = vmatprep.subr.mxu0 0.0
  %111 = vmatpush1.msra.mxu0 %v78
  %112 = vmatprep.subr.mxu0 0.0
  %113 = vmatpush1.msra.mxu0 %v79
  %114 = vmatprep.subr.mxu0 0.0
  %115 = vmatpush1.msra.mxu0 %v80
  %116 = vmatprep.subr.mxu0 0.0
  %117 = vmatpush1.msra.mxu0 %v81
  %118 = vmatprep.subr.mxu0 0.0
  %119 = vmatpush1.msra.mxu0 %v82
  %120 = vmatprep.subr.mxu0 0.0
  %121 = vmatpush1.msra.mxu0 %v83
  %122 = vmatprep.subr.mxu0 0.0
  %123 = vmatpush1.msra.mxu0 %v84
  %124 = vmatprep.subr.mxu0 0.0
  %125 = vmatpush1.msra.mxu0 0.0
  %126 = vmatprep.subr.mxu0 0.0
  %127 = vmatpush1.msra.mxu0 0.0
  %128 = vmatprep.subr.mxu0 0.0
  %129 = vmatpush1.msra.mxu0 0.0
  %130 = vmatprep.subr.mxu0 0.0
  %131 = vmatpush1.msra.mxu0 0.0
  %132 = vmatprep.subr.mxu0 0.0
  %133 = vmatpush1.msra.mxu0 0.0
  %134 = vmatprep.subr.mxu0 0.0
  %135 = vmatpush1.msra.mxu0 0.0
  %136 = vmatprep.subr.mxu0 0.0
  %137 = vmatpush1.msra.mxu0 0.0
  %138 = vmatprep.subr.mxu0 0.0
  %139 = vmatpush1.msra.mxu0 0.0
  %140 = vmatprep.subr.mxu0 0.0
  %141 = vmatpush1.msra.mxu0 0.0
  %142 = vmatprep.subr.mxu0 0.0
  %143 = vmatpush1.msra.mxu0 0.0
  %144 = vmatprep.subr.mxu0 0.0
  %145 = vmatpush1.msra.mxu0 0.0
  %146 = vmatprep.subr.mxu0 0.0
  %147 = vmatpush1.msra.mxu0 0.0
  %148 = vmatprep.subr.mxu0 0.0
  %149 = vmatpush1.msra.mxu0 0.0
  %150 = vmatprep.subr.mxu0 0.0
  %151 = vmatpush1.msra.mxu0 0.0
  %152 = vmatprep.subr.mxu0 0.0
  %153 = vmatpush1.msra.mxu0 0.0
  %154 = vmatprep.subr.mxu0 0.0
  %155 = vmatpush1.msra.mxu0 0.0
  %156 = vmatprep.mubr.f32.mxu0 0.0
  %157 = vmatmul.mubr.f32.gmra.mrb[0].mxu0 %v20
  %v158 = vpop.f32.mrb[0].mxu0
  %v159 = vadd.f32 %v90, %v158
  %v160 = vpop.f32.mrb[0].mxu0
  %161 = vmatprep.mubr.f32.mxu0 0.0
  %162 = vmatmul.mubr.f32.gmra.mrb[0].mxu0 %v21
  %v163 = vpop.f32.mrb[0].mxu0
  %v164 = vadd.f32 %v90, %v163
  %v165 = vpop.f32.mrb[0].mxu0
  %166 = vmatprep.mubr.f32.mxu0 0.0
  %167 = vmatmul.mubr.f32.gmra.mrb[0].mxu0 %v22
  %v168 = vpop.f32.mrb[0].mxu0
  %v169 = vadd.f32 %v90, %v168
  %v170 = vpop.f32.mrb[0].mxu0
  %171 = vmatprep.mubr.f32.mxu0 0.0
  %172 = vmatmul.mubr.f32.gmra.mrb[0].mxu0 %v23
  %v173 = vpop.f32.mrb[0].mxu0
  %v174 = vadd.f32 %v90, %v173
  %v175 = vpop.f32.mrb[0].mxu0
  %176 = vmatprep.mubr.f32.mxu0 0.0
  %177 = vmatmul.mubr.f32.gmra.mrb[0].mxu0 %v24
  %v178 = vpop.f32.mrb[0].mxu0
  %v179 = vadd.f32 %v90, %v178
  %v180 = vpop.f32.mrb[0].mxu0
  %181 = vmatprep.mubr.f32.mxu0 0.0
  %182 = vmatmul.mubr.f32.gmra.mrb[0].mxu0 %v25
  %v183 = vpop.f32.mrb[0].mxu0
  %v184 = vadd.f32 %v90, %v183
  %v185 = vpop.f32.mrb[0].mxu0
  %186 = vmatprep.mubr.f32.mxu0 0.0
  %187 = vmatmul.mubr.f32.gmra.mrb[0].mxu0 %v26
  %v188 = vpop.f32.mrb[0].mxu0
  %v189 = vadd.f32 %v90, %v188
  %v190 = vpop.f32.mrb[0].mxu0
  %191 = vmatprep.mubr.f32.mxu0 0.0
  %192 = vmatmul.mubr.f32.gmra.mrb[0].mxu0 %v27
  %v193 = vpop.f32.mrb[0].mxu0
  %v194 = vadd.f32 %v90, %v193
  %v195 = vpop.f32.mrb[0].mxu0
  %196 = vmatprep.mubr.f32.mxu0 0.0
  %197 = vmatmul.mubr.f32.gmra.mrb[0].mxu0 %v28
  %v198 = vpop.f32.mrb[0].mxu0
  %v199 = vadd.f32 %v90, %v198
  %v200 = vpop.f32.mrb[0].mxu0
  %201 = vmatprep.mubr.f32.mxu0 0.0
  %202 = vmatmul.mubr.f32.gmra.mrb[0].mxu0 %v29
  %v203 = vpop.f32.mrb[0].mxu0
  %v204 = vadd.f32 %v90, %v203
  %v205 = vpop.f32.mrb[0].mxu0
  %206 = vmatprep.mubr.f32.mxu0 0.0
  %207 = vmatmul.mubr.f32.gmra.mrb[0].mxu0 %v30
  %v208 = vpop.f32.mrb[0].mxu0
  %v209 = vadd.f32 %v90, %v208
  %v210 = vpop.f32.mrb[0].mxu0
  %211 = vmatprep.mubr.f32.mxu0 0.0
  %212 = vmatmul.mubr.f32.gmra.mrb[0].mxu0 %v31
  %v213 = vpop.f32.mrb[0].mxu0
  %v214 = vadd.f32 %v90, %v213
  %v215 = vpop.f32.mrb[0].mxu0
  %216 = vmatprep.mubr.f32.mxu0 0.0
  %217 = vmatmul.mubr.f32.gmra.mrb[0].mxu0 %v32
  %v218 = vpop.f32.mrb[0].mxu0
  %v219 = vadd.f32 %v90, %v218
  %v220 = vpop.f32.mrb[0].mxu0
  %221 = vmatprep.mubr.f32.mxu0 0.0
  %222 = vmatmul.mubr.f32.gmra.mrb[0].mxu0 %v33
  %v223 = vpop.f32.mrb[0].mxu0
  %v224 = vadd.f32 %v90, %v223
  %v225 = vpop.f32.mrb[0].mxu0
  %226 = vmatprep.mubr.f32.mxu0 0.0
  %227 = vmatmul.mubr.f32.gmra.mrb[0].mxu0 %v34
  %v228 = vpop.f32.mrb[0].mxu0
  %v229 = vadd.f32 %v90, %v228
  %v230 = vpop.f32.mrb[0].mxu0
  %231 = vmatprep.mubr.f32.mxu0 0.0
  %232 = vmatmul.mubr.f32.gmra.mrb[0].mxu0 %v35
  %v233 = vpop.f32.mrb[0].mxu0
  %v234 = vadd.f32 %v90, %v233
  %v235 = vpop.f32.mrb[0].mxu0
  %236 = vmatprep.mubr.f32.mxu0 0.0
  %237 = vmatmul.mubr.f32.gmra.mrb[0].mxu0 %v36
  %v238 = vpop.f32.mrb[0].mxu0
  %v239 = vadd.f32 %v90, %v238
  %v240 = vpop.f32.mrb[0].mxu0
  %241 = vmatprep.mubr.f32.mxu0 0.0
  %242 = vmatmul.mubr.f32.gmra.mrb[0].mxu0 %v37
  %v243 = vpop.f32.mrb[0].mxu0
  %v244 = vadd.f32 %v90, %v243
  %v245 = vpop.f32.mrb[0].mxu0
  %246 = vmatprep.mubr.f32.mxu0 0.0
  %247 = vmatmul.mubr.f32.gmra.mrb[0].mxu0 %v38
  %v248 = vpop.f32.mrb[0].mxu0
  %v249 = vadd.f32 %v90, %v248
  %v250 = vpop.f32.mrb[0].mxu0
  %251 = vmatprep.mubr.f32.mxu0 0.0
  %252 = vmatmul.mubr.f32.gmra.mrb[0].mxu0 %v39
  %v253 = vpop.f32.mrb[0].mxu0
  %v254 = vadd.f32 %v90, %v253
  %v255 = vpop.f32.mrb[0].mxu0
  %256 = vmatprep.mubr.f32.mxu0 0.0
  %257 = vmatmul.mubr.f32.gmra.mrb[0].mxu0 %v40
  %v258 = vpop.f32.mrb[0].mxu0
  %v259 = vadd.f32 %v90, %v258
  %v260 = vpop.f32.mrb[0].mxu0
  %261 = vmatprep.mubr.f32.mxu0 0.0
  %262 = vmatmul.mubr.f32.gmra.mrb[0].mxu0 %v41
  %v263 = vpop.f32.mrb[0].mxu0
  %v264 = vadd.f32 %v90, %v263
  %v265 = vpop.f32.mrb[0].mxu0
  %266 = vmatprep.mubr.f32.mxu0 0.0
  %267 = vmatmul.mubr.f32.gmra.mrb[0].mxu0 %v42
  %v268 = vpop.f32.mrb[0].mxu0
  %v269 = vadd.f32 %v90, %v268
  %v270 = vpop.f32.mrb[0].mxu0
  %271 = vmatprep.mubr.f32.mxu0 0.0
  %272 = vmatmul.mubr.f32.gmra.mrb[0].mxu0 %v43
  %v273 = vpop.f32.mrb[0].mxu0
  %v274 = vadd.f32 %v90, %v273
  %v275 = vpop.f32.mrb[0].mxu0
  %276 = vmatprep.mubr.f32.mxu0 0.0
  %277 = vmatmul.mubr.f32.gmra.mrb[0].mxu0 %v44
  %v278 = vpop.f32.mrb[0].mxu0
  %v279 = vadd.f32 %v90, %v278
  %v280 = vpop.f32.mrb[0].mxu0
  %281 = vmatprep.mubr.f32.mxu0 0.0
  %282 = vmatmul.mubr.f32.gmra.mrb[0].mxu0 %v45
  %v283 = vpop.f32.mrb[0].mxu0
  %v284 = vadd.f32 %v90, %v283
  %v285 = vpop.f32.mrb[0].mxu0
  %286 = vmatprep.mubr.f32.mxu0 0.0
  %287 = vmatmul.mubr.f32.gmra.mrb[0].mxu0 %v46
  %v288 = vpop.f32.mrb[0].mxu0
  %v289 = vadd.f32 %v90, %v288
  %v290 = vpop.f32.mrb[0].mxu0
  %291 = vmatprep.mubr.f32.mxu0 0.0
  %292 = vmatmul.mubr.f32.gmra.mrb[0].mxu0 %v47
  %v293 = vpop.f32.mrb[0].mxu0
  %v294 = vadd.f32 %v90, %v293
  %v295 = vpop.f32.mrb[0].mxu0
  %296 = vmatprep.mubr.f32.mxu0 0.0
  %297 = vmatmul.mubr.f32.gmra.mrb[0].mxu0 %v48
  %v298 = vpop.f32.mrb[0].mxu0
  %v299 = vadd.f32 %v90, %v298
  %v300 = vpop.f32.mrb[0].mxu0
  %301 = vmatprep.mubr.f32.mxu0 0.0
  %302 = vmatmul.mubr.f32.gmra.mrb[0].mxu0 %v49
  %v303 = vpop.f32.mrb[0].mxu0
  %v304 = vadd.f32 %v90, %v303
  %v305 = vpop.f32.mrb[0].mxu0
  %306 = vmatprep.mubr.f32.mxu0 0.0
  %307 = vmatmul.mubr.f32.gmra.mrb[0].mxu0 %v50
  %v308 = vpop.f32.mrb[0].mxu0
  %v309 = vadd.f32 %v90, %v308
  %v310 = vpop.f32.mrb[0].mxu0
  %311 = vmatprep.mubr.f32.mxu0 0.0
  %312 = vmatmul.mubr.f32.gmra.mrb[0].mxu0 %v51
  %v313 = vpop.f32.mrb[0].mxu0
  %v314 = vadd.f32 %v90, %v313
  %v315 = vpop.f32.mrb[0].mxu0
  %316 = vmatprep.mubr.f32.mxu0 0.0
  %317 = vmatmul.mubr.f32.gmra.mrb[0].mxu0 %v52
  %v318 = vpop.f32.mrb[0].mxu0
  %v319 = vadd.f32 %v90, %v318
  %v320 = vpop.f32.mrb[0].mxu0
  %321 = vmatprep.mubr.f32.mxu0 0.0
  %322 = vmatmul.mubr.f32.gmra.mrb[0].mxu0 %v53
  %v323 = vpop.f32.mrb[0].mxu0
  %v324 = vadd.f32 %v90, %v323
  %v325 = vpop.f32.mrb[0].mxu0
  %326 = vmatprep.mubr.f32.mxu0 0.0
  %327 = vmatmul.mubr.f32.gmra.mrb[0].mxu0 %v54
  %v328 = vpop.f32.mrb[0].mxu0
  %v329 = vadd.f32 %v90, %v328
  %v330 = vpop.f32.mrb[0].mxu0
  %331 = vmatprep.mubr.f32.mxu0 0.0
  %332 = vmatmul.mubr.f32.gmra.mrb[0].mxu0 %v55
  %v333 = vpop.f32.mrb[0].mxu0
  %v334 = vadd.f32 %v90, %v333
  %v335 = vpop.f32.mrb[0].mxu0
  %336 = vmatprep.mubr.f32.mxu0 0.0
  %337 = vmatmul.mubr.f32.gmra.mrb[0].mxu0 %v56
  %v338 = vpop.f32.mrb[0].mxu0
  %v339 = vadd.f32 %v90, %v338
  %v340 = vpop.f32.mrb[0].mxu0
  %341 = vmatprep.mubr.f32.mxu0 0.0
  %342 = vmatmul.mubr.f32.gmra.mrb[0].mxu0 %v57
  %v343 = vpop.f32.mrb[0].mxu0
  %v344 = vadd.f32 %v90, %v343
  %v345 = vpop.f32.mrb[0].mxu0
  %346 = vmatprep.mubr.f32.mxu0 0.0
  %347 = vmatmul.mubr.f32.gmra.mrb[0].mxu0 %v58
  %v348 = vpop.f32.mrb[0].mxu0
  %v349 = vadd.f32 %v90, %v348
  %v350 = vpop.f32.mrb[0].mxu0
  %351 = vmatprep.mubr.f32.mxu0 0.0
  %352 = vmatmul.mubr.f32.gmra.mrb[0].mxu0 %v59
  %v353 = vpop.f32.mrb[0].mxu0
  %v354 = vadd.f32 %v90, %v353
  %v355 = vpop.f32.mrb[0].mxu0
  %356 = vmatprep.mubr.f32.mxu0 0.0
  %357 = vmatmul.mubr.f32.gmra.mrb[0].mxu0 %v60
  %v358 = vpop.f32.mrb[0].mxu0
  %v359 = vadd.f32 %v90, %v358
  %v360 = vpop.f32.mrb[0].mxu0
  %361 = vmatprep.mubr.f32.mxu0 0.0
  %362 = vmatmul.mubr.f32.gmra.mrb[0].mxu0 %v61
  %v363 = vpop.f32.mrb[0].mxu0
  %v364 = vadd.f32 %v90, %v363
  %v365 = vpop.f32.mrb[0].mxu0
  %366 = vmatprep.mubr.f32.mxu0 0.0
  %367 = vmatmul.mubr.f32.gmra.mrb[0].mxu0 %v62
  %v368 = vpop.f32.mrb[0].mxu0
  %v369 = vadd.f32 %v90, %v368
  %v370 = vpop.f32.mrb[0].mxu0
  %371 = vmatprep.mubr.f32.mxu0 0.0
  %372 = vmatmul.mubr.f32.gmra.mrb[0].mxu0 %v63
  %v373 = vpop.f32.mrb[0].mxu0
  %v374 = vadd.f32 %v90, %v373
  %v375 = vpop.f32.mrb[0].mxu0
  %376 = vmatprep.mubr.f32.mxu0 0.0
  %377 = vmatmul.mubr.f32.gmra.mrb[0].mxu0 %v64
  %v378 = vpop.f32.mrb[0].mxu0
  %v379 = vadd.f32 %v90, %v378
  %v380 = vpop.f32.mrb[0].mxu0
  %381 = vmatprep.mubr.f32.mxu0 0.0
  %382 = vmatmul.mubr.f32.gmra.mrb[0].mxu0 %v65
  %v383 = vpop.f32.mrb[0].mxu0
  %v384 = vadd.f32 %v90, %v383
  %v385 = vpop.f32.mrb[0].mxu0
  %386 = vmatprep.mubr.f32.mxu0 0.0
  %387 = vmatmul.mubr.f32.gmra.mrb[0].mxu0 %v66
  %v388 = vpop.f32.mrb[0].mxu0
  %v389 = vadd.f32 %v90, %v388
  %v390 = vpop.f32.mrb[0].mxu0
  %391 = vmatprep.mubr.f32.mxu0 0.0
  %392 = vmatmul.mubr.f32.gmra.mrb[0].mxu0 %v67
  %v393 = vpop.f32.mrb[0].mxu0
  %v394 = vadd.f32 %v90, %v393
  %v395 = vpop.f32.mrb[0].mxu0
  %396 = vmatprep.mubr.f32.mxu0 0.0
  %397 = vmatmul.mubr.f32.gmra.mrb[0].mxu0 %v68
  %v398 = vpop.f32.mrb[0].mxu0
  %v399 = vadd.f32 %v90, %v398
  %v400 = vpop.f32.mrb[0].mxu0
  %401 = vdwg.mxu0
  %v402 = vadd.f32 %v159, %v164
  %v403 = vadd.f32 %v402, %v169
  %v404 = vadd.f32 %v403, %v174
  %v405 = vadd.f32 %v404, %v179
  %v406 = vadd.f32 %v405, %v184
  %v407 = vadd.f32 %v406, %v189
  %v408 = vadd.f32 %v407, %v194
  %v409 = vadd.f32 %v408, %v199
  %v410 = vadd.f32 %v409, %v204
  %v411 = vadd.f32 %v410, %v209
  %v412 = vadd.f32 %v411, %v214
  %v413 = vadd.f32 %v412, %v219
  %v414 = vadd.f32 %v413, %v224
  %v415 = vadd.f32 %v414, %v229
  %v416 = vadd.f32 %v415, %v234
  %v417 = vadd.f32 %v416, %v239
  %v418 = vadd.f32 %v417, %v244
  %v419 = vadd.f32 %v418, %v249
  %v420 = vadd.f32 %v419, %v254
  %v421 = vadd.f32 %v420, %v259
  %v422 = vadd.f32 %v421, %v264
  %v423 = vadd.f32 %v422, %v269
  %v424 = vadd.f32 %v423, %v274
  %v425 = vadd.f32 %v424, %v279
  %v426 = vadd.f32 %v425, %v284
  %v427 = vadd.f32 %v426, %v289
  %v428 = vadd.f32 %v427, %v294
  %v429 = vadd.f32 %v428, %v299
  %v430 = vadd.f32 %v429, %v304
  %v431 = vadd.f32 %v430, %v309
  %v432 = vadd.f32 %v431, %v314
  %v433 = vadd.f32 %v432, %v319
  %v434 = vadd.f32 %v433, %v324
  %v435 = vadd.f32 %v434, %v329
  %v436 = vadd.f32 %v435, %v334
  %v437 = vadd.f32 %v436, %v339
  %v438 = vadd.f32 %v437, %v344
  %v439 = vadd.f32 %v438, %v349
  %v440 = vadd.f32 %v439, %v354
  %v441 = vadd.f32 %v440, %v359
  %v442 = vadd.f32 %v441, %v364
  %v443 = vadd.f32 %v442, %v369
  %v444 = vadd.f32 %v443, %v374
  %v445 = vadd.f32 %v444, %v379
  %v446 = vadd.f32 %v445, %v384
  %v447 = vadd.f32 %v446, %v389
  %v448 = vadd.f32 %v447, %v394
  %v449 = vadd.f32 %v448, %v399
  %v450 = vrot.slane %v449, 4
  %v451 = vadd.f32 %v449, %v450
  %v452 = vrot.slane %v451, 2
  %v453 = vadd.f32 %v451, %v452
  %v454 = vrot.slane %v453, 1
  %v455 = vadd.f32 %v453, %v454
  %v456 = vrcp.pop 392.0
  %v457 = vmul.f32 %v455, %v456
  %v458 = vsub.f32 %v159, %v457
  %v459 = vsub.f32 %v164, %v457
  %v460 = vsub.f32 %v169, %v457
  %v461 = vsub.f32 %v174, %v457
  %v462 = vsub.f32 %v179, %v457
  %v463 = vsub.f32 %v184, %v457
  %v464 = vsub.f32 %v189, %v457
  %v465 = vsub.f32 %v194, %v457
  %v466 = vsub.f32 %v199, %v457
  %v467 = vsub.f32 %v204, %v457
  %v468 = vsub.f32 %v209, %v457
  %v469 = vsub.f32 %v214, %v457
  %v470 = vsub.f32 %v219, %v457
  %v471 = vsub.f32 %v224, %v457
  %v472 = vsub.f32 %v229, %v457
  %v473 = vsub.f32 %v234, %v457
  %v474 = vsub.f32 %v239, %v457
  %v475 = vsub.f32 %v244, %v457
  %v476 = vsub.f32 %v249, %v457
  %v477 = vsub.f32 %v254, %v457
  %v478 = vsub.f32 %v259, %v457
  %v479 = vsub.f32 %v264, %v457
  %v480 = vsub.f32 %v269, %v457
  %v481 = vsub.f32 %v274, %v457
  %v482 = vsub.f32 %v279, %v457
  %v483 = vsub.f32 %v284, %v457
  %v484 = vsub.f32 %v289, %v457
  %v485 = vsub.f32 %v294, %v457
  %v486 = vsub.f32 %v299, %v457
  %v487 = vsub.f32 %v304, %v457
  %v488 = vsub.f32 %v309, %v457
  %v489 = vsub.f32 %v314, %v457
  %v490 = vsub.f32 %v319, %v457
  %v491 = vsub.f32 %v324, %v457
  %v492 = vsub.f32 %v329, %v457
  %v493 = vsub.f32 %v334, %v457
  %v494 = vsub.f32 %v339, %v457
  %v495 = vsub.f32 %v344, %v457
  %v496 = vsub.f32 %v349, %v457
  %v497 = vsub.f32 %v354, %v457
  %v498 = vsub.f32 %v359, %v457
  %v499 = vsub.f32 %v364, %v457
  %v500 = vsub.f32 %v369, %v457
  %v501 = vsub.f32 %v374, %v457
  %v502 = vsub.f32 %v379, %v457
  %v503 = vsub.f32 %v384, %v457
  %v504 = vsub.f32 %v389, %v457
  %v505 = vsub.f32 %v394, %v457
  %v506 = vsub.f32 %v399, %v457
  %v507 = vmul.f32 %v458, %v458
  %v508 = vmul.f32 %v459, %v459
  %v509 = vmul.f32 %v460, %v460
  %v510 = vmul.f32 %v461, %v461
  %v511 = vmul.f32 %v462, %v462
  %v512 = vmul.f32 %v463, %v463
  %v513 = vmul.f32 %v464, %v464
  %v514 = vmul.f32 %v465, %v465
  %v515 = vmul.f32 %v466, %v466
  %v516 = vmul.f32 %v467, %v467
  %v517 = vmul.f32 %v468, %v468
  %v518 = vmul.f32 %v469, %v469
  %v519 = vmul.f32 %v470, %v470
  %v520 = vmul.f32 %v471, %v471
  %v521 = vmul.f32 %v472, %v472
  %v522 = vmul.f32 %v473, %v473
  %v523 = vmul.f32 %v474, %v474
  %v524 = vmul.f32 %v475, %v475
  %v525 = vmul.f32 %v476, %v476
  %v526 = vmul.f32 %v477, %v477
  %v527 = vmul.f32 %v478, %v478
  %v528 = vmul.f32 %v479, %v479
  %v529 = vmul.f32 %v480, %v480
  %v530 = vmul.f32 %v481, %v481
  %v531 = vmul.f32 %v482, %v482
  %v532 = vmul.f32 %v483, %v483
  %v533 = vmul.f32 %v484, %v484
  %v534 = vmul.f32 %v485, %v485
  %v535 = vmul.f32 %v486, %v486
  %v536 = vmul.f32 %v487, %v487
  %v537 = vmul.f32 %v488, %v488
  %v538 = vmul.f32 %v489, %v489
  %v539 = vmul.f32 %v490, %v490
  %v540 = vmul.f32 %v491, %v491
  %v541 = vmul.f32 %v492, %v492
  %v542 = vmul.f32 %v493, %v493
  %v543 = vmul.f32 %v494, %v494
  %v544 = vmul.f32 %v495, %v495
  %v545 = vmul.f32 %v496, %v496
  %v546 = vmul.f32 %v497, %v497
  %v547 = vmul.f32 %v498, %v498
  %v548 = vmul.f32 %v499, %v499
  %v549 = vmul.f32 %v500, %v500
  %v550 = vmul.f32 %v501, %v501
  %v551 = vmul.f32 %v502, %v502
  %v552 = vmul.f32 %v503, %v503
  %v553 = vmul.f32 %v504, %v504
  %v554 = vmul.f32 %v505, %v505
  %v555 = vmul.f32 %v506, %v506
  %v556 = vadd.f32 %v507, %v508
  %v557 = vadd.f32 %v556, %v509
  %v558 = vadd.f32 %v557, %v510
  %v559 = vadd.f32 %v558, %v511
  %v560 = vadd.f32 %v559, %v512
  %v561 = vadd.f32 %v560, %v513
  %v562 = vadd.f32 %v561, %v514
  %v563 = vadd.f32 %v562, %v515
  %v564 = vadd.f32 %v563, %v516
  %v565 = vadd.f32 %v564, %v517
  %v566 = vadd.f32 %v565, %v518
  %v567 = vadd.f32 %v566, %v519
  %v568 = vadd.f32 %v567, %v520
  %v569 = vadd.f32 %v568, %v521
  %v570 = vadd.f32 %v569, %v522
  %v571 = vadd.f32 %v570, %v523
  %v572 = vadd.f32 %v571, %v524
  %v573 = vadd.f32 %v572, %v525
  %v574 = vadd.f32 %v573, %v526
  %v575 = vadd.f32 %v574, %v527
  %v576 = vadd.f32 %v575, %v528
  %v577 = vadd.f32 %v576, %v529
  %v578 = vadd.f32 %v577, %v530
  %v579 = vadd.f32 %v578, %v531
  %v580 = vadd.f32 %v579, %v532
  %v581 = vadd.f32 %v580, %v533
  %v582 = vadd.f32 %v581, %v534
  %v583 = vadd.f32 %v582, %v535
  %v584 = vadd.f32 %v583, %v536
  %v585 = vadd.f32 %v584, %v537
  %v586 = vadd.f32 %v585, %v538
  %v587 = vadd.f32 %v586, %v539
  %v588 = vadd.f32 %v587, %v540
  %v589 = vadd.f32 %v588, %v541
  %v590 = vadd.f32 %v589, %v542
  %v591 = vadd.f32 %v590, %v543
  %v592 = vadd.f32 %v591, %v544
  %v593 = vadd.f32 %v592, %v545
  %v594 = vadd.f32 %v593, %v546
  %v595 = vadd.f32 %v594, %v547
  %v596 = vadd.f32 %v595, %v548
  %v597 = vadd.f32 %v596, %v549
  %v598 = vadd.f32 %v597, %v550
  %v599 = vadd.f32 %v598, %v551
  %v600 = vadd.f32 %v599, %v552
  %v601 = vadd.f32 %v600, %v553
  %v602 = vadd.f32 %v601, %v554
  %v603 = vadd.f32 %v602, %v555
  %v604 = vrot.slane %v603, 4
  %v605 = vadd.f32 %v603, %v604
  %v606 = vrot.slane %v605, 2
  %v607 = vadd.f32 %v605, %v606
  %v608 = vrot.slane %v607, 1
  %v609 = vadd.f32 %v607, %v608
  %v610 = vmul.f32 %v609, %v456
  %v611 = vadd.f32 %v610, 1e-05
  %v612 = vrsqrt.pop %v611
  %v613 = vmul.f32 %v458, %v612
  %v614 = vmul.f32 %v459, %v612
  %v615 = vmul.f32 %v460, %v612
  %v616 = vmul.f32 %v461, %v612
  %v617 = vmul.f32 %v462, %v612
  %v618 = vmul.f32 %v463, %v612
  %v619 = vmul.f32 %v464, %v612
  %v620 = vmul.f32 %v465, %v612
  %v621 = vmul.f32 %v466, %v612
  %v622 = vmul.f32 %v467, %v612
  %v623 = vmul.f32 %v468, %v612
  %v624 = vmul.f32 %v469, %v612
  %v625 = vmul.f32 %v470, %v612
  %v626 = vmul.f32 %v471, %v612
  %v627 = vmul.f32 %v472, %v612
  %v628 = vmul.f32 %v473, %v612
  %v629 = vmul.f32 %v474, %v612
  %v630 = vmul.f32 %v475, %v612
  %v631 = vmul.f32 %v476, %v612
  %v632 = vmul.f32 %v477, %v612
  %v633 = vmul.f32 %v478, %v612
  %v634 = vmul.f32 %v479, %v612
  %v635 = vmul.f32 %v480, %v612
  %v636 = vmul.f32 %v481, %v612
  %v637 = vmul.f32 %v482, %v612
  %v638 = vmul.f32 %v483, %v612
  %v639 = vmul.f32 %v484, %v612
  %v640 = vmul.f32 %v485, %v612
  %v641 = vmul.f32 %v486, %v612
  %v642 = vmul.f32 %v487, %v612
  %v643 = vmul.f32 %v488, %v612
  %v644 = vmul.f32 %v489, %v612
  %v645 = vmul.f32 %v490, %v612
  %v646 = vmul.f32 %v491, %v612
  %v647 = vmul.f32 %v492, %v612
  %v648 = vmul.f32 %v493, %v612
  %v649 = vmul.f32 %v494, %v612
  %v650 = vmul.f32 %v495, %v612
  %v651 = vmul.f32 %v496, %v612
  %v652 = vmul.f32 %v497, %v612
  %v653 = vmul.f32 %v498, %v612
  %v654 = vmul.f32 %v499, %v612
  %v655 = vmul.f32 %v500, %v612
  %v656 = vmul.f32 %v501, %v612
  %v657 = vmul.f32 %v502, %v612
  %v658 = vmul.f32 %v503, %v612
  %v659 = vmul.f32 %v504, %v612
  %v660 = vmul.f32 %v505, %v612
  %v661 = vmul.f32 %v506, %v612
  %v662 = vld [vmem:[%s3] sm:$0x1]
  %v664 = vlaneseq
  %v665 = vshrl.u32 %v664, 7
  %v666 = vsub.s32 0, %v665
  %v667 = vrot.slane %v662, %v666
  %v669 = vmul.f32 %v613, %v667
  %v670 = vmul.f32 %v614, %v667
  %v671 = vmul.f32 %v615, %v667
  %v672 = vmul.f32 %v616, %v667
  %v673 = vmul.f32 %v617, %v667
  %v674 = vmul.f32 %v618, %v667
  %v675 = vmul.f32 %v619, %v667
  %v676 = vmul.f32 %v620, %v667
  %v677 = vmul.f32 %v621, %v667
  %v678 = vmul.f32 %v622, %v667
  %v679 = vmul.f32 %v623, %v667
  %v680 = vmul.f32 %v624, %v667
  %v681 = vmul.f32 %v625, %v667
  %v682 = vmul.f32 %v626, %v667
  %v683 = vmul.f32 %v627, %v667
  %v684 = vmul.f32 %v628, %v667
  %v685 = vmul.f32 %v629, %v667
  %v686 = vmul.f32 %v630, %v667
  %v687 = vmul.f32 %v631, %v667
  %v688 = vmul.f32 %v632, %v667
  %v689 = vmul.f32 %v633, %v667
  %v690 = vmul.f32 %v634, %v667
  %v691 = vmul.f32 %v635, %v667
  %v692 = vmul.f32 %v636, %v667
  %v693 = vmul.f32 %v637, %v667
  %v694 = vmul.f32 %v638, %v667
  %v695 = vmul.f32 %v639, %v667
  %v696 = vmul.f32 %v640, %v667
  %v697 = vmul.f32 %v641, %v667
  %v698 = vmul.f32 %v642, %v667
  %v699 = vmul.f32 %v643, %v667
  %v700 = vmul.f32 %v644, %v667
  %v701 = vmul.f32 %v645, %v667
  %v702 = vmul.f32 %v646, %v667
  %v703 = vmul.f32 %v647, %v667
  %v704 = vmul.f32 %v648, %v667
  %v705 = vmul.f32 %v649, %v667
  %v706 = vmul.f32 %v650, %v667
  %v707 = vmul.f32 %v651, %v667
  %v708 = vmul.f32 %v652, %v667
  %v709 = vmul.f32 %v653, %v667
  %v710 = vmul.f32 %v654, %v667
  %v711 = vmul.f32 %v655, %v667
  %v712 = vmul.f32 %v656, %v667
  %v713 = vmul.f32 %v657, %v667
  %v714 = vmul.f32 %v658, %v667
  %v715 = vmul.f32 %v659, %v667
  %v716 = vmul.f32 %v660, %v667
  %v717 = vmul.f32 %v661, %v667
  %v718 = vld [vmem:[%s4] sm:$0x1]
  %v720 = vlaneseq
  %v721 = vshrl.u32 %v720, 7
  %v722 = vsub.s32 0, %v721
  %v723 = vrot.slane %v718, %v722
  %v725 = vadd.f32 %v669, %v723
  %v726 = vadd.f32 %v670, %v723
  %v727 = vadd.f32 %v671, %v723
  %v728 = vadd.f32 %v672, %v723
  %v729 = vadd.f32 %v673, %v723
  %v730 = vadd.f32 %v674, %v723
  %v731 = vadd.f32 %v675, %v723
  %v732 = vadd.f32 %v676, %v723
  %v733 = vadd.f32 %v677, %v723
  %v734 = vadd.f32 %v678, %v723
  %v735 = vadd.f32 %v679, %v723
  %v736 = vadd.f32 %v680, %v723
  %v737 = vadd.f32 %v681, %v723
  %v738 = vadd.f32 %v682, %v723
  %v739 = vadd.f32 %v683, %v723
  %v740 = vadd.f32 %v684, %v723
  %v741 = vadd.f32 %v685, %v723
  %v742 = vadd.f32 %v686, %v723
  %v743 = vadd.f32 %v687, %v723
  %v744 = vadd.f32 %v688, %v723
  %v745 = vadd.f32 %v689, %v723
  %v746 = vadd.f32 %v690, %v723
  %v747 = vadd.f32 %v691, %v723
  %v748 = vadd.f32 %v692, %v723
  %v749 = vadd.f32 %v693, %v723
  %v750 = vadd.f32 %v694, %v723
  %v751 = vadd.f32 %v695, %v723
  %v752 = vadd.f32 %v696, %v723
  %v753 = vadd.f32 %v697, %v723
  %v754 = vadd.f32 %v698, %v723
  %v755 = vadd.f32 %v699, %v723
  %v756 = vadd.f32 %v700, %v723
  %v757 = vadd.f32 %v701, %v723
  %v758 = vadd.f32 %v702, %v723
  %v759 = vadd.f32 %v703, %v723
  %v760 = vadd.f32 %v704, %v723
  %v761 = vadd.f32 %v705, %v723
  %v762 = vadd.f32 %v706, %v723
  %v763 = vadd.f32 %v707, %v723
  %v764 = vadd.f32 %v708, %v723
  %v765 = vadd.f32 %v709, %v723
  %v766 = vadd.f32 %v710, %v723
  %v767 = vadd.f32 %v711, %v723
  %v768 = vadd.f32 %v712, %v723
  %v769 = vadd.f32 %v713, %v723
  %v770 = vadd.f32 %v714, %v723
  %v771 = vadd.f32 %v715, %v723
  %v772 = vadd.f32 %v716, %v723
  %v773 = vadd.f32 %v717, %v723
  %v774 = vmax.f32 %v725, 0.0
  %v775 = vmax.f32 %v726, 0.0
  %v776 = vmax.f32 %v727, 0.0
  %v777 = vmax.f32 %v728, 0.0
  %v778 = vmax.f32 %v729, 0.0
  %v779 = vmax.f32 %v730, 0.0
  %v780 = vmax.f32 %v731, 0.0
  %v781 = vmax.f32 %v732, 0.0
  %v782 = vmax.f32 %v733, 0.0
  %v783 = vmax.f32 %v734, 0.0
  %v784 = vmax.f32 %v735, 0.0
  %v785 = vmax.f32 %v736, 0.0
  %v786 = vmax.f32 %v737, 0.0
  %v787 = vmax.f32 %v738, 0.0
  %v788 = vmax.f32 %v739, 0.0
  %v789 = vmax.f32 %v740, 0.0
  %v790 = vmax.f32 %v741, 0.0
  %v791 = vmax.f32 %v742, 0.0
  %v792 = vmax.f32 %v743, 0.0
  %v793 = vmax.f32 %v744, 0.0
  %v794 = vmax.f32 %v745, 0.0
  %v795 = vmax.f32 %v746, 0.0
  %v796 = vmax.f32 %v747, 0.0
  %v797 = vmax.f32 %v748, 0.0
  %v798 = vmax.f32 %v749, 0.0
  %v799 = vmax.f32 %v750, 0.0
  %v800 = vmax.f32 %v751, 0.0
  %v801 = vmax.f32 %v752, 0.0
  %v802 = vmax.f32 %v753, 0.0
  %v803 = vmax.f32 %v754, 0.0
  %v804 = vmax.f32 %v755, 0.0
  %v805 = vmax.f32 %v756, 0.0
  %v806 = vmax.f32 %v757, 0.0
  %v807 = vmax.f32 %v758, 0.0
  %v808 = vmax.f32 %v759, 0.0
  %v809 = vmax.f32 %v760, 0.0
  %v810 = vmax.f32 %v761, 0.0
  %v811 = vmax.f32 %v762, 0.0
  %v812 = vmax.f32 %v763, 0.0
  %v813 = vmax.f32 %v764, 0.0
  %v814 = vmax.f32 %v765, 0.0
  %v815 = vmax.f32 %v766, 0.0
  %v816 = vmax.f32 %v767, 0.0
  %v817 = vmax.f32 %v768, 0.0
  %v818 = vmax.f32 %v769, 0.0
  %v819 = vmax.f32 %v770, 0.0
  %v820 = vmax.f32 %v771, 0.0
  %v821 = vmax.f32 %v772, 0.0
  %v822 = vmax.f32 %v773, 0.0
  %823 = vst [vmem:[%s5] sm:$0xff] %v774
  %824 = vst [vmem:[%s5 + $0x8] sm:$0xff] %v775
  %825 = vst [vmem:[%s5 + $0x10] sm:$0xff] %v776
  %826 = vst [vmem:[%s5 + $0x18] sm:$0xff] %v777
  %827 = vst [vmem:[%s5 + $0x20] sm:$0xff] %v778
  %828 = vst [vmem:[%s5 + $0x28] sm:$0xff] %v779
  %829 = vst [vmem:[%s5 + $0x30] sm:$0xff] %v780
  %830 = vst [vmem:[%s5 + $0x38] sm:$0xff] %v781
  %831 = vst [vmem:[%s5 + $0x40] sm:$0xff] %v782
  %832 = vst [vmem:[%s5 + $0x48] sm:$0xff] %v783
  %833 = vst [vmem:[%s5 + $0x50] sm:$0xff] %v784
  %834 = vst [vmem:[%s5 + $0x58] sm:$0xff] %v785
  %835 = vst [vmem:[%s5 + $0x60] sm:$0xff] %v786
  %836 = vst [vmem:[%s5 + $0x68] sm:$0xff] %v787
  %837 = vst [vmem:[%s5 + $0x70] sm:$0xff] %v788
  %838 = vst [vmem:[%s5 + $0x78] sm:$0xff] %v789
  %839 = vst [vmem:[%s5 + $0x80] sm:$0xff] %v790
  %840 = vst [vmem:[%s5 + $0x88] sm:$0xff] %v791
  %841 = vst [vmem:[%s5 + $0x90] sm:$0xff] %v792
  %842 = vst [vmem:[%s5 + $0x98] sm:$0xff] %v793
  %843 = vst [vmem:[%s5 + $0xa0] sm:$0xff] %v794
  %844 = vst [vmem:[%s5 + $0xa8] sm:$0xff] %v795
  %845 = vst [vmem:[%s5 + $0xb0] sm:$0xff] %v796
  %846 = vst [vmem:[%s5 + $0xb8] sm:$0xff] %v797
  %847 = vst [vmem:[%s5 + $0xc0] sm:$0xff] %v798
  %848 = vst [vmem:[%s5 + $0xc8] sm:$0xff] %v799
  %849 = vst [vmem:[%s5 + $0xd0] sm:$0xff] %v800
  %850 = vst [vmem:[%s5 + $0xd8] sm:$0xff] %v801
  %851 = vst [vmem:[%s5 + $0xe0] sm:$0xff] %v802
  %852 = vst [vmem:[%s5 + $0xe8] sm:$0xff] %v803
  %853 = vst [vmem:[%s5 + $0xf0] sm:$0xff] %v804
  %854 = vst [vmem:[%s5 + $0xf8] sm:$0xff] %v805
  %855 = vst [vmem:[%s5 + $0x100] sm:$0xff] %v806
  %856 = vst [vmem:[%s5 + $0x108] sm:$0xff] %v807
  %857 = vst [vmem:[%s5 + $0x110] sm:$0xff] %v808
  %858 = vst [vmem:[%s5 + $0x118] sm:$0xff] %v809
  %859 = vst [vmem:[%s5 + $0x120] sm:$0xff] %v810
  %860 = vst [vmem:[%s5 + $0x128] sm:$0xff] %v811
  %861 = vst [vmem:[%s5 + $0x130] sm:$0xff] %v812
  %862 = vst [vmem:[%s5 + $0x138] sm:$0xff] %v813
  %863 = vst [vmem:[%s5 + $0x140] sm:$0xff] %v814
  %864 = vst [vmem:[%s5 + $0x148] sm:$0xff] %v815
  %865 = vst [vmem:[%s5 + $0x150] sm:$0xff] %v816
  %866 = vst [vmem:[%s5 + $0x158] sm:$0xff] %v817
  %867 = vst [vmem:[%s5 + $0x160] sm:$0xff] %v818
  %868 = vst [vmem:[%s5 + $0x168] sm:$0xff] %v819
  %869 = vst [vmem:[%s5 + $0x170] sm:$0xff] %v820
  %870 = vst [vmem:[%s5 + $0x178] sm:$0xff] %v821
  %871 = vst [vmem:[%s5 + $0x180] sm:$0xff] %v822
  // Predicated region
  $region22: #{generator_forward.6} parent=0 // pred_check
    _
  $region23: #{generator_forward.6} parent=0 // pred_check_branch
    %873 = sbr.rel (0) target = $region25
  $region24: #{generator_forward.6} parent=0 // pred_region
    _
  $region25: #{generator_forward.6} parent=0 // pred_fallthru
    _
  // Predicated region
  $region26: #{generator_forward.6} parent=0 // pred_check
    _
  $region27: #{generator_forward.6} parent=0 // pred_check_branch
    %875 = sbr.rel (0) target = $region29
  $region28: #{generator_forward.6} parent=0 // pred_region
    _
  $region29: #{generator_forward.6} parent=0 // pred_fallthru
    _

// kernel: generator_forward.7
$region0: #{generator_forward.7}
  #allocation0 [shape = 'u32[]', space=smem, size = 0x4, offset = 0x4, fixed_abs, tag = 'smem constant byte address 0x4 - core index']
  #allocation1 [shape = 'u32[144,128]{1,0:T(1,128)}', space=vmem, size = 0x12000, scoped, tag = 'internal scratch']
  %s0 = inlined_call_operand.vmem [shape: f32[1568,64], index: 0, kind: input, shape index: {}]
  %s1 = inlined_call_operand.vmem [shape: f32[64,128], index: 1, kind: input, shape index: {}]
  %s2 = inlined_call_operand.vmem [shape: f32[1,128], index: 2, kind: input, shape index: {}]
  %s3 = inlined_call_operand.vmem [shape: f32[1568,128], index: 3, kind: output, shape index: {}]
  %s4 = sld [smem:[#allocation0]]
  $region45: #{generator_forward.7} parent=0
    _
  %s6 = ssub.s32 1, %s4
  %s7 = scalar_select 0, %s6, %s4
  loop: start=0, step=1, limit=6
  $region2: #{generator_forward.7} parent=0 // loop_pre_header
    _
  $region3: #{generator_forward.7} parent=0 // loop_header
    %s9 = sphi 0, %s13
    %p10 = scmp.ge.s32.totalorder %s9, 6
    %s19 = sphi 0, %s21
    %s22 = sphi 0, %s19
    %s23 = sphi 0, %s22
    %s39 = sphi 0, %s23
    %s43 = sphi 0, %s43
    %s45 = sphi 0, %s43
    %s46 = sphi 0, %s45
    %s60 = sphi 0, %s46
    %s64 = sphi 0, %s64
    %s66 = sphi 0, %s64
    %s67 = sphi 0, %s66
    %s81 = sphi 0, %s67
    %s87 = sphi 0, %s89
    %s90 = sphi 0, %s87
    %s91 = sphi 0, %s90
    %s107 = sphi 0, %s91
  $region4: #{generator_forward.7} parent=0 // loop_header_branch
    %12 = sbr.rel (%p10) target = $region8
  $region5: #{generator_forward.7} parent=0 // loop_body
    %s14 = ssub.s32 %s9, 1
    %s15 = ssub.s32 %s9, 2
    %s16 = sadd.s32 %s9, 1
    %s17 = ssub.s32 %s9, %s16
    %p18 = scmp.eq.s32.totalorder %s17, 0
    %s20 = sadd.s32 %s19, 1
    %s21 = scalar_select %p18, %s19, %s20
    %p24 = pneg %p18
    %p25 = scmp.eq.s32.totalorder %s9, 3
    %p26 = por %p24, %p25
    %p27 = scmp.ne.s32.totalorder %s19, %s22
    %p28 = scmp.eq.s32.totalorder %s9, 0
    %p29 = por %p27, %p28
    %p30 = scmp.ne.s32.totalorder %s19, %s22
    %p31 = scmp.eq.s32.totalorder %s14, 3
    %p32 = por %p30, %p31
    %p33 = scmp.ne.s32.totalorder %s22, %s23
    %p34 = scmp.eq.s32.totalorder %s14, 0
    %p35 = por %p33, %p34
    %p36 = scmp.ne.s32.totalorder %s22, %s23
    %p37 = scmp.eq.s32.totalorder %s15, 3
    %p38 = por %p36, %p37
    %p40 = scmp.ne.s32.totalorder %s23, %s39
    %p41 = scmp.eq.s32.totalorder %s15, 0
    %p42 = por %p40, %p41
    %s44 = sadd.s32 %s43, 1
    %p47 = scmp.eq.s32.totalorder %s9, 3
    %p48 = scmp.ne.s32.totalorder %s43, %s45
    %p49 = scmp.eq.s32.totalorder %s9, 0
    %p50 = por %p48, %p49
    %p51 = scmp.ne.s32.totalorder %s43, %s45
    %p52 = scmp.eq.s32.totalorder %s14, 3
    %p53 = por %p51, %p52
    %p54 = scmp.ne.s32.totalorder %s45, %s46
    %p55 = scmp.eq.s32.totalorder %s14, 0
    %p56 = por %p54, %p55
    %p57 = scmp.ne.s32.totalorder %s45, %s46
    %p58 = scmp.eq.s32.totalorder %s15, 3
    %p59 = por %p57, %p58
    %p61 = scmp.ne.s32.totalorder %s46, %s60
    %p62 = scmp.eq.s32.totalorder %s15, 0
    %p63 = por %p61, %p62
    %s65 = sadd.s32 %s64, 1
    %p68 = scmp.eq.s32.totalorder %s9, 3
    %p69 = scmp.ne.s32.totalorder %s64, %s66
    %p70 = scmp.eq.s32.totalorder %s9, 0
    %p71 = por %p69, %p70
    %p72 = scmp.ne.s32.totalorder %s64, %s66
    %p73 = scmp.eq.s32.totalorder %s14, 3
    %p74 = por %p72, %p73
    %p75 = scmp.ne.s32.totalorder %s66, %s67
    %p76 = scmp.eq.s32.totalorder %s14, 0
    %p77 = por %p75, %p76
    %p78 = scmp.ne.s32.totalorder %s66, %s67
    %p79 = scmp.eq.s32.totalorder %s15, 3
    %p80 = por %p78, %p79
    %p82 = scmp.ne.s32.totalorder %s67, %s81
    %p83 = scmp.eq.s32.totalorder %s15, 0
    %p84 = por %p82, %p83
    %s85 = ssub.s32 %s9, %s16
    %p86 = scmp.eq.s32.totalorder %s85, 0
    %s88 = sadd.s32 %s87, 1
    %s89 = scalar_select %p86, %s87, %s88
    %p92 = pneg %p86
    %p93 = scmp.eq.s32.totalorder %s9, 3
    %p94 = por %p92, %p93
    %p95 = scmp.ne.s32.totalorder %s87, %s90
    %p96 = scmp.eq.s32.totalorder %s9, 0
    %p97 = por %p95, %p96
    %p98 = scmp.ne.s32.totalorder %s87, %s90
    %p99 = scmp.eq.s32.totalorder %s14, 3
    %p100 = por %p98, %p99
    %p101 = scmp.ne.s32.totalorder %s90, %s91
    %p102 = scmp.eq.s32.totalorder %s14, 0
    %p103 = por %p101, %p102
    %p104 = scmp.ne.s32.totalorder %s90, %s91
    %p105 = scmp.eq.s32.totalorder %s15, 3
    %p106 = por %p104, %p105
    %p108 = scmp.ne.s32.totalorder %s91, %s107
    %p109 = scmp.eq.s32.totalorder %s15, 0
    %p110 = por %p108, %p109
    %p111 = scmp.le.s32.totalorder 1, %s9
    %p112 = scmp.lt.s32.totalorder %s9, 5
    %p113 = pnand %p111, %p112
    %p114 = pneg %p113
    // Predicated region
    $region9: #{generator_forward.7} parent=5 // pred_check
      _
    $region10: #{generator_forward.7} parent=5 // pred_check_branch
      %116 = sbr.rel (%p113) target = $region12
    $region11: #{generator_forward.7} parent=5 // pred_region
      %s117 = ssub.s32 %s9, 1
      // Predicated region
      $region13: #{generator_forward.7} parent=11 // pred_check
        %p118 = pneg %p56
      $region14: #{generator_forward.7} parent=11 // pred_check_branch
        %120 = sbr.rel (%p118) target = $region16
      $region15: #{generator_forward.7} parent=11 // pred_region
        _
      $region16: #{generator_forward.7} parent=11 // pred_fallthru
        _
      // Predicated region
      $region17: #{generator_forward.7} parent=11 // pred_check
        %p121 = pneg %p77
      $region18: #{generator_forward.7} parent=11 // pred_check_branch
        %123 = sbr.rel (%p121) target = $region20
      $region19: #{generator_forward.7} parent=11 // pred_region
        _
      $region20: #{generator_forward.7} parent=11 // pred_fallthru
        _
    $region12: #{generator_forward.7} parent=5 // pred_fallthru
      _
    %p124 = scmp.lt.s32.totalorder %s9, 4
    // Predicated region
    $region21: #{generator_forward.7} parent=5 // pred_check
      %p125 = pneg %p124
    $region22: #{generator_forward.7} parent=5 // pred_check_branch
      %127 = sbr.rel (%p125) target = $region24
    $region23: #{generator_forward.7} parent=5 // pred_region
      // Predicated region
      $region25: #{generator_forward.7} parent=23 // pred_check
        %p128 = pneg %p29
      $region26: #{generator_forward.7} parent=23 // pred_check_branch
        %130 = sbr.rel (%p128) target = $region28
      $region27: #{generator_forward.7} parent=23 // pred_region
        %s131 = smul.u32 49, %s9
        %p132 = scmp.lt.s32.totalorder %s131, 195
        %s133 = scalar_select %p132, %s131, 195
        %s134 = smul.addr %s133, 8
        %s135 = scalar_lea.vmem %s0, %s134
        %s136 = smul.u32 49, %s9
      $region28: #{generator_forward.7} parent=23 // pred_fallthru
        _
    $region24: #{generator_forward.7} parent=5 // pred_fallthru
      _
    %p137 = scmp.le.s32.totalorder 1, %s9
    %p138 = scmp.lt.s32.totalorder %s9, 5
    %p139 = pnand %p137, %p138
    %p140 = pneg %p139
    // Predicated region
    $region29: #{generator_forward.7} parent=5 // pred_check
      _
    $region30: #{generator_forward.7} parent=5 // pred_check_branch
      %142 = sbr.rel (%p139) target = $region32
    $region31: #{generator_forward.7} parent=5 // pred_region
      %s143 = ssub.s32 %s9, 1
      %s144 = smul.u32 49, %s14
      %p145 = scmp.lt.s32.totalorder %s144, 195
      %s146 = scalar_select %p145, %s144, 195
      %s147 = smul.addr %s146, 8
      %s148 = scalar_lea.vmem %s0, %s147
      %p149 = pneg %p35
      %p150 = pneg %p32
      %p151 = pneg %p56
      %p152 = pneg %p53
      %p153 = pneg %p77
      %p154 = pneg %p74
      %p155 = pneg %p103
      %p156 = pneg %p100
      %s157 = smul.u32 49, %s14
      %p158 = scmp.lt.s32.totalorder %s157, 195
      %s159 = scalar_select %p158, %s157, 195
      %s160 = smul.addr %s159, 8
      %s161 = scalar_lea.vmem %s3, %s160
      %s162 = smul.u32 49, %s14
      %p163 = scmp.lt.s32.totalorder %s162, 195
      %s164 = scalar_select %p163, %s162, 195
      %s165 = smul.addr %s164, 8
      %s166 = scalar_lea.vmem %s0, %s165
      %s167 = smul.u32 49, %s14
      %s168 = smul.u32 49, %s14
      %p169 = scmp.lt.s32.totalorder %s168, 195
      %s170 = scalar_select %p169, %s168, 195
      %s171 = smul.addr %s170, 8
      %s172 = scalar_lea.vmem %s3, %s171
      %s173 = smul.u32 49, %s14
      %v174 = vld [vmem:[%s166] sm:$0xff]
      %v175 = vld [vmem:[%s166 + $0x8] sm:$0xff]
      %v176 = vld [vmem:[%s166 + $0x10] sm:$0xff]
      %v177 = vld [vmem:[%s166 + $0x18] sm:$0xff]
      %v178 = vld [vmem:[%s166 + $0x20] sm:$0xff]
      %v179 = vld [vmem:[%s166 + $0x28] sm:$0xff]
      %v180 = vld [vmem:[%s166 + $0x30] sm:$0xff]
      %v181 = vld [vmem:[%s166 + $0x38] sm:$0xff]
      %v182 = vld [vmem:[%s166 + $0x40] sm:$0xff]
      %v183 = vld [vmem:[%s166 + $0x48] sm:$0xff]
      %v184 = vld [vmem:[%s166 + $0x50] sm:$0xff]
      %v185 = vld [vmem:[%s166 + $0x58] sm:$0xff]
      %v186 = vld [vmem:[%s166 + $0x60] sm:$0xff]
      %v187 = vld [vmem:[%s166 + $0x68] sm:$0xff]
      %v188 = vld [vmem:[%s166 + $0x70] sm:$0xff]
      %v189 = vld [vmem:[%s166 + $0x78] sm:$0xff]
      %v190 = vld [vmem:[%s166 + $0x80] sm:$0xff]
      %v191 = vld [vmem:[%s166 + $0x88] sm:$0xff]
      %v192 = vld [vmem:[%s166 + $0x90] sm:$0xff]
      %v193 = vld [vmem:[%s166 + $0x98] sm:$0xff]
      %v194 = vld [vmem:[%s166 + $0xa0] sm:$0xff]
      %v195 = vld [vmem:[%s166 + $0xa8] sm:$0xff]
      %v196 = vld [vmem:[%s166 + $0xb0] sm:$0xff]
      %v197 = vld [vmem:[%s166 + $0xb8] sm:$0xff]
      %v198 = vld [vmem:[%s166 + $0xc0] sm:$0xff]
      %v199 = vld [vmem:[%s166 + $0xc8] sm:$0xff]
      %v200 = vld [vmem:[%s166 + $0xd0] sm:$0xff]
      %v201 = vld [vmem:[%s166 + $0xd8] sm:$0xff]
      %v202 = vld [vmem:[%s166 + $0xe0] sm:$0xff]
      %v203 = vld [vmem:[%s166 + $0xe8] sm:$0xff]
      %v204 = vld [vmem:[%s166 + $0xf0] sm:$0xff]
      %v205 = vld [vmem:[%s166 + $0xf8] sm:$0xff]
      %v206 = vld [vmem:[%s166 + $0x100] sm:$0xff]
      %v207 = vld [vmem:[%s166 + $0x108] sm:$0xff]
      %v208 = vld [vmem:[%s166 + $0x110] sm:$0xff]
      %v209 = vld [vmem:[%s166 + $0x118] sm:$0xff]
      %v210 = vld [vmem:[%s166 + $0x120] sm:$0xff]
      %v211 = vld [vmem:[%s166 + $0x128] sm:$0xff]
      %v212 = vld [vmem:[%s166 + $0x130] sm:$0xff]
      %v213 = vld [vmem:[%s166 + $0x138] sm:$0xff]
      %v214 = vld [vmem:[%s166 + $0x140] sm:$0xff]
      %v215 = vld [vmem:[%s166 + $0x148] sm:$0xff]
      %v216 = vld [vmem:[%s166 + $0x150] sm:$0xff]
      %v217 = vld [vmem:[%s166 + $0x158] sm:$0xff]
      %v218 = vld [vmem:[%s166 + $0x160] sm:$0xff]
      %v219 = vld [vmem:[%s166 + $0x168] sm:$0xff]
      %v220 = vld [vmem:[%s166 + $0x170] sm:$0xff]
      %v221 = vld [vmem:[%s166 + $0x178] sm:$0xff]
      %v222 = vld [vmem:[%s166 + $0x180] sm:$0xff]
      %v223 = vld [vmem:[%s1] sm:$0xff]
      %v224 = vld [vmem:[%s1 + $0x8] sm:$0xff]
      %v225 = vld [vmem:[%s1 + $0x10] sm:$0xff]
      %v226 = vld [vmem:[%s1 + $0x18] sm:$0xff]
      %v227 = vld [vmem:[%s1 + $0x20] sm:$0xff]
      %v228 = vld [vmem:[%s1 + $0x28] sm:$0xff]
      %v229 = vld [vmem:[%s1 + $0x30] sm:$0xff]
      %v230 = vld [vmem:[%s1 + $0x38] sm:$0xff]
      %v231 = vld [vmem:[%s2] sm:$0x1]
      %v233 = vlaneseq
      %v234 = vshrl.u32 %v233, 7
      %v235 = vsub.s32 0, %v234
      %v236 = vrot.slane %v231, %v235
      %vm238 = vcmask 523264
      %v240 = vsel %vm238, %v174, 0
      %v243 = vsel %vm238, %v175, 0
      %v246 = vsel %vm238, %v176, 0
      %v249 = vsel %vm238, %v177, 0
      %v252 = vsel %vm238, %v178, 0
      %v255 = vsel %vm238, %v179, 0
      %v258 = vsel %vm238, %v180, 0
      %v261 = vsel %vm238, %v181, 0
      %v264 = vsel %vm238, %v182, 0
      %v267 = vsel %vm238, %v183, 0
      %v270 = vsel %vm238, %v184, 0
      %v273 = vsel %vm238, %v185, 0
      %v276 = vsel %vm238, %v186, 0
      %v279 = vsel %vm238, %v187, 0
      %v282 = vsel %vm238, %v188, 0
      %v285 = vsel %vm238, %v189, 0
      %v288 = vsel %vm238, %v190, 0
      %v291 = vsel %vm238, %v191, 0
      %v294 = vsel %vm238, %v192, 0
      %v297 = vsel %vm238, %v193, 0
      %v300 = vsel %vm238, %v194, 0
      %v303 = vsel %vm238, %v195, 0
      %v306 = vsel %vm238, %v196, 0
      %v309 = vsel %vm238, %v197, 0
      %v312 = vsel %vm238, %v198, 0
      %v315 = vsel %vm238, %v199, 0
      %v318 = vsel %vm238, %v200, 0
      %v321 = vsel %vm238, %v201, 0
      %v324 = vsel %vm238, %v202, 0
      %v327 = vsel %vm238, %v203, 0
      %v330 = vsel %vm238, %v204, 0
      %v333 = vsel %vm238, %v205, 0
      %v336 = vsel %vm238, %v206, 0
      %v339 = vsel %vm238, %v207, 0
      %v342 = vsel %vm238, %v208, 0
      %v345 = vsel %vm238, %v209, 0
      %v348 = vsel %vm238, %v210, 0
      %v351 = vsel %vm238, %v211, 0
      %v354 = vsel %vm238, %v212, 0
      %v357 = vsel %vm238, %v213, 0
      %v360 = vsel %vm238, %v214, 0
      %v363 = vsel %vm238, %v215, 0
      %v366 = vsel %vm238, %v216, 0
      %v369 = vsel %vm238, %v217, 0
      %v372 = vsel %vm238, %v218, 0
      %v375 = vsel %vm238, %v219, 0
      %v378 = vsel %vm238, %v220, 0
      %v381 = vsel %vm238, %v221, 0
      %v384 = vsel %vm238, %v222, 0
      %386 = vmatprep.subr.mxu0 0.0
      %387 = vmatpush1.msra.mxu0 %v223
      %388 = vmatprep.subr.mxu0 0.0
      %389 = vmatpush1.msra.mxu0 %v224
      %390 = vmatprep.subr.mxu0 0.0
      %391 = vmatpush1.msra.mxu0 %v225
      %392 = vmatprep.subr.mxu0 0.0
      %393 = vmatpush1.msra.mxu0 %v226
      %394 = vmatprep.subr.mxu0 0.0
      %395 = vmatpush1.msra.mxu0 %v227
      %396 = vmatprep.subr.mxu0 0.0
      %397 = vmatpush1.msra.mxu0 %v228
      %398 = vmatprep.subr.mxu0 0.0
      %399 = vmatpush1.msra.mxu0 %v229
      %400 = vmatprep.subr.mxu0 0.0
      %401 = vmatpush1.msra.mxu0 %v230
      %402 = vmatprep.subr.mxu0 0.0
      %403 = vmatpush1.msra.mxu0 0.0
      %404 = vmatprep.subr.mxu0 0.0
      %405 = vmatpush1.msra.mxu0 0.0
      %406 = vmatprep.subr.mxu0 0.0
      %407 = vmatpush1.msra.mxu0 0.0
      %408 = vmatprep.subr.mxu0 0.0
      %409 = vmatpush1.msra.mxu0 0.0
      %410 = vmatprep.subr.mxu0 0.0
      %411 = vmatpush1.msra.mxu0 0.0
      %412 = vmatprep.subr.mxu0 0.0
      %413 = vmatpush1.msra.mxu0 0.0
      %414 = vmatprep.subr.mxu0 0.0
      %415 = vmatpush1.msra.mxu0 0.0
      %416 = vmatprep.subr.mxu0 0.0
      %417 = vmatpush1.msra.mxu0 0.0
      %418 = vmatprep.subr.mxu0 0.0
      %419 = vmatpush1.msra.mxu0 0.0
      %420 = vmatprep.subr.mxu0 0.0
      %421 = vmatpush1.msra.mxu0 0.0
      %422 = vmatprep.subr.mxu0 0.0
      %423 = vmatpush1.msra.mxu0 0.0
      %424 = vmatprep.subr.mxu0 0.0
      %425 = vmatpush1.msra.mxu0 0.0
      %426 = vmatprep.subr.mxu0 0.0
      %427 = vmatpush1.msra.mxu0 0.0
      %428 = vmatprep.subr.mxu0 0.0
      %429 = vmatpush1.msra.mxu0 0.0
      %430 = vmatprep.subr.mxu0 0.0
      %431 = vmatpush1.msra.mxu0 0.0
      %432 = vmatprep.subr.mxu0 0.0
      %433 = vmatpush1.msra.mxu0 0.0
      %434 = vmatprep.subr.mxu0 0.0
      %435 = vmatpush1.msra.mxu0 0.0
      %436 = vmatprep.subr.mxu0 0.0
      %437 = vmatpush1.msra.mxu0 0.0
      %438 = vmatprep.subr.mxu0 0.0
      %439 = vmatpush1.msra.mxu0 0.0
      %440 = vmatprep.subr.mxu0 0.0
      %441 = vmatpush1.msra.mxu0 0.0
      %442 = vmatprep.subr.mxu0 0.0
      %443 = vmatpush1.msra.mxu0 0.0
      %444 = vmatprep.subr.mxu0 0.0
      %445 = vmatpush1.msra.mxu0 0.0
      %446 = vmatprep.subr.mxu0 0.0
      %447 = vmatpush1.msra.mxu0 0.0
      %448 = vmatprep.subr.mxu0 0.0
      %449 = vmatpush1.msra.mxu0 0.0
      %450 = vmatprep.mubr.f32.mxu0 0.0
      %451 = vmatmul.mubr.f32.gmra.mrb[0].mxu0 %v240
      %v452 = vpop.f32.mrb[0].mxu0
      %v453 = vadd.f32 %v236, %v452
      %v454 = vpop.f32.mrb[0].mxu0
      %455 = vmatprep.mubr.f32.mxu0 0.0
      %456 = vmatmul.mubr.f32.gmra.mrb[0].mxu0 %v243
      %v457 = vpop.f32.mrb[0].mxu0
      %v458 = vadd.f32 %v236, %v457
      %v459 = vpop.f32.mrb[0].mxu0
      %460 = vmatprep.mubr.f32.mxu0 0.0
      %461 = vmatmul.mubr.f32.gmra.mrb[0].mxu0 %v246
      %v462 = vpop.f32.mrb[0].mxu0
      %v463 = vadd.f32 %v236, %v462
      %v464 = vpop.f32.mrb[0].mxu0
      %465 = vmatprep.mubr.f32.mxu0 0.0
      %466 = vmatmul.mubr.f32.gmra.mrb[0].mxu0 %v249
      %v467 = vpop.f32.mrb[0].mxu0
      %v468 = vadd.f32 %v236, %v467
      %v469 = vpop.f32.mrb[0].mxu0
      %470 = vmatprep.mubr.f32.mxu0 0.0
      %471 = vmatmul.mubr.f32.gmra.mrb[0].mxu0 %v252
      %v472 = vpop.f32.mrb[0].mxu0
      %v473 = vadd.f32 %v236, %v472
      %v474 = vpop.f32.mrb[0].mxu0
      %475 = vmatprep.mubr.f32.mxu0 0.0
      %476 = vmatmul.mubr.f32.gmra.mrb[0].mxu0 %v255
      %v477 = vpop.f32.mrb[0].mxu0
      %v478 = vadd.f32 %v236, %v477
      %v479 = vpop.f32.mrb[0].mxu0
      %480 = vmatprep.mubr.f32.mxu0 0.0
      %481 = vmatmul.mubr.f32.gmra.mrb[0].mxu0 %v258
      %v482 = vpop.f32.mrb[0].mxu0
      %v483 = vadd.f32 %v236, %v482
      %v484 = vpop.f32.mrb[0].mxu0
      %485 = vmatprep.mubr.f32.mxu0 0.0
      %486 = vmatmul.mubr.f32.gmra.mrb[0].mxu0 %v261
      %v487 = vpop.f32.mrb[0].mxu0
      %v488 = vadd.f32 %v236, %v487
      %v489 = vpop.f32.mrb[0].mxu0
      %490 = vmatprep.mubr.f32.mxu0 0.0
      %491 = vmatmul.mubr.f32.gmra.mrb[0].mxu0 %v264
      %v492 = vpop.f32.mrb[0].mxu0
      %v493 = vadd.f32 %v236, %v492
      %v494 = vpop.f32.mrb[0].mxu0
      %495 = vmatprep.mubr.f32.mxu0 0.0
      %496 = vmatmul.mubr.f32.gmra.mrb[0].mxu0 %v267
      %v497 = vpop.f32.mrb[0].mxu0
      %v498 = vadd.f32 %v236, %v497
      %v499 = vpop.f32.mrb[0].mxu0
      %500 = vmatprep.mubr.f32.mxu0 0.0
      %501 = vmatmul.mubr.f32.gmra.mrb[0].mxu0 %v270
      %v502 = vpop.f32.mrb[0].mxu0
      %v503 = vadd.f32 %v236, %v502
      %v504 = vpop.f32.mrb[0].mxu0
      %505 = vmatprep.mubr.f32.mxu0 0.0
      %506 = vmatmul.mubr.f32.gmra.mrb[0].mxu0 %v273
      %v507 = vpop.f32.mrb[0].mxu0
      %v508 = vadd.f32 %v236, %v507
      %v509 = vpop.f32.mrb[0].mxu0
      %510 = vmatprep.mubr.f32.mxu0 0.0
      %511 = vmatmul.mubr.f32.gmra.mrb[0].mxu0 %v276
      %v512 = vpop.f32.mrb[0].mxu0
      %v513 = vadd.f32 %v236, %v512
      %v514 = vpop.f32.mrb[0].mxu0
      %515 = vmatprep.mubr.f32.mxu0 0.0
      %516 = vmatmul.mubr.f32.gmra.mrb[0].mxu0 %v279
      %v517 = vpop.f32.mrb[0].mxu0
      %v518 = vadd.f32 %v236, %v517
      %v519 = vpop.f32.mrb[0].mxu0
      %520 = vmatprep.mubr.f32.mxu0 0.0
      %521 = vmatmul.mubr.f32.gmra.mrb[0].mxu0 %v282
      %v522 = vpop.f32.mrb[0].mxu0
      %v523 = vadd.f32 %v236, %v522
      %v524 = vpop.f32.mrb[0].mxu0
      %525 = vmatprep.mubr.f32.mxu0 0.0
      %526 = vmatmul.mubr.f32.gmra.mrb[0].mxu0 %v285
      %v527 = vpop.f32.mrb[0].mxu0
      %v528 = vadd.f32 %v236, %v527
      %v529 = vpop.f32.mrb[0].mxu0
      %530 = vmatprep.mubr.f32.mxu0 0.0
      %531 = vmatmul.mubr.f32.gmra.mrb[0].mxu0 %v288
      %v532 = vpop.f32.mrb[0].mxu0
      %v533 = vadd.f32 %v236, %v532
      %v534 = vpop.f32.mrb[0].mxu0
      %535 = vmatprep.mubr.f32.mxu0 0.0
      %536 = vmatmul.mubr.f32.gmra.mrb[0].mxu0 %v291
      %v537 = vpop.f32.mrb[0].mxu0
      %v538 = vadd.f32 %v236, %v537
      %v539 = vpop.f32.mrb[0].mxu0
      %540 = vmatprep.mubr.f32.mxu0 0.0
      %541 = vmatmul.mubr.f32.gmra.mrb[0].mxu0 %v294
      %v542 = vpop.f32.mrb[0].mxu0
      %v543 = vadd.f32 %v236, %v542
      %v544 = vpop.f32.mrb[0].mxu0
      %545 = vmatprep.mubr.f32.mxu0 0.0
      %546 = vmatmul.mubr.f32.gmra.mrb[0].mxu0 %v297
      %v547 = vpop.f32.mrb[0].mxu0
      %v548 = vadd.f32 %v236, %v547
      %v549 = vpop.f32.mrb[0].mxu0
      %550 = vmatprep.mubr.f32.mxu0 0.0
      %551 = vmatmul.mubr.f32.gmra.mrb[0].mxu0 %v300
      %v552 = vpop.f32.mrb[0].mxu0
      %v553 = vadd.f32 %v236, %v552
      %v554 = vpop.f32.mrb[0].mxu0
      %555 = vmatprep.mubr.f32.mxu0 0.0
      %556 = vmatmul.mubr.f32.gmra.mrb[0].mxu0 %v303
      %v557 = vpop.f32.mrb[0].mxu0
      %v558 = vadd.f32 %v236, %v557
      %v559 = vpop.f32.mrb[0].mxu0
      %560 = vmatprep.mubr.f32.mxu0 0.0
      %561 = vmatmul.mubr.f32.gmra.mrb[0].mxu0 %v306
      %v562 = vpop.f32.mrb[0].mxu0
      %v563 = vadd.f32 %v236, %v562
      %v564 = vpop.f32.mrb[0].mxu0
      %565 = vmatprep.mubr.f32.mxu0 0.0
      %566 = vmatmul.mubr.f32.gmra.mrb[0].mxu0 %v309
      %v567 = vpop.f32.mrb[0].mxu0
      %v568 = vadd.f32 %v236, %v567
      %v569 = vpop.f32.mrb[0].mxu0
      %570 = vmatprep.mubr.f32.mxu0 0.0
      %571 = vmatmul.mubr.f32.gmra.mrb[0].mxu0 %v312
      %v572 = vpop.f32.mrb[0].mxu0
      %v573 = vadd.f32 %v236, %v572
      %v574 = vpop.f32.mrb[0].mxu0
      %575 = vmatprep.mubr.f32.mxu0 0.0
      %576 = vmatmul.mubr.f32.gmra.mrb[0].mxu0 %v315
      %v577 = vpop.f32.mrb[0].mxu0
      %v578 = vadd.f32 %v236, %v577
      %v579 = vpop.f32.mrb[0].mxu0
      %580 = vmatprep.mubr.f32.mxu0 0.0
      %581 = vmatmul.mubr.f32.gmra.mrb[0].mxu0 %v318
      %v582 = vpop.f32.mrb[0].mxu0
      %v583 = vadd.f32 %v236, %v582
      %v584 = vpop.f32.mrb[0].mxu0
      %585 = vmatprep.mubr.f32.mxu0 0.0
      %586 = vmatmul.mubr.f32.gmra.mrb[0].mxu0 %v321
      %v587 = vpop.f32.mrb[0].mxu0
      %v588 = vadd.f32 %v236, %v587
      %v589 = vpop.f32.mrb[0].mxu0
      %590 = vmatprep.mubr.f32.mxu0 0.0
      %591 = vmatmul.mubr.f32.gmra.mrb[0].mxu0 %v324
      %v592 = vpop.f32.mrb[0].mxu0
      %v593 = vadd.f32 %v236, %v592
      %v594 = vpop.f32.mrb[0].mxu0
      %595 = vmatprep.mubr.f32.mxu0 0.0
      %596 = vmatmul.mubr.f32.gmra.mrb[0].mxu0 %v327
      %v597 = vpop.f32.mrb[0].mxu0
      %v598 = vadd.f32 %v236, %v597
      %v599 = vpop.f32.mrb[0].mxu0
      %600 = vmatprep.mubr.f32.mxu0 0.0
      %601 = vmatmul.mubr.f32.gmra.mrb[0].mxu0 %v330
      %v602 = vpop.f32.mrb[0].mxu0
      %v603 = vadd.f32 %v236, %v602
      %v604 = vpop.f32.mrb[0].mxu0
      %605 = vmatprep.mubr.f32.mxu0 0.0
      %606 = vmatmul.mubr.f32.gmra.mrb[0].mxu0 %v333
      %v607 = vpop.f32.mrb[0].mxu0
      %v608 = vadd.f32 %v236, %v607
      %v609 = vpop.f32.mrb[0].mxu0
      %610 = vmatprep.mubr.f32.mxu0 0.0
      %611 = vmatmul.mubr.f32.gmra.mrb[0].mxu0 %v336
      %v612 = vpop.f32.mrb[0].mxu0
      %v613 = vadd.f32 %v236, %v612
      %v614 = vpop.f32.mrb[0].mxu0
      %615 = vmatprep.mubr.f32.mxu0 0.0
      %616 = vmatmul.mubr.f32.gmra.mrb[0].mxu0 %v339
      %v617 = vpop.f32.mrb[0].mxu0
      %v618 = vadd.f32 %v236, %v617
      %v619 = vpop.f32.mrb[0].mxu0
      %620 = vmatprep.mubr.f32.mxu0 0.0
      %621 = vmatmul.mubr.f32.gmra.mrb[0].mxu0 %v342
      %v622 = vpop.f32.mrb[0].mxu0
      %v623 = vadd.f32 %v236, %v622
      %v624 = vpop.f32.mrb[0].mxu0
      %625 = vmatprep.mubr.f32.mxu0 0.0
      %626 = vmatmul.mubr.f32.gmra.mrb[0].mxu0 %v345
      %v627 = vpop.f32.mrb[0].mxu0
      %v628 = vadd.f32 %v236, %v627
      %v629 = vpop.f32.mrb[0].mxu0
      %630 = vmatprep.mubr.f32.mxu0 0.0
      %631 = vmatmul.mubr.f32.gmra.mrb[0].mxu0 %v348
      %v632 = vpop.f32.mrb[0].mxu0
      %v633 = vadd.f32 %v236, %v632
      %v634 = vpop.f32.mrb[0].mxu0
      %635 = vmatprep.mubr.f32.mxu0 0.0
      %636 = vmatmul.mubr.f32.gmra.mrb[0].mxu0 %v351
      %v637 = vpop.f32.mrb[0].mxu0
      %v638 = vadd.f32 %v236, %v637
      %v639 = vpop.f32.mrb[0].mxu0
      %640 = vmatprep.mubr.f32.mxu0 0.0
      %641 = vmatmul.mubr.f32.gmra.mrb[0].mxu0 %v354
      %v642 = vpop.f32.mrb[0].mxu0
      %v643 = vadd.f32 %v236, %v642
      %v644 = vpop.f32.mrb[0].mxu0
      %645 = vmatprep.mubr.f32.mxu0 0.0
      %646 = vmatmul.mubr.f32.gmra.mrb[0].mxu0 %v357
      %v647 = vpop.f32.mrb[0].mxu0
      %v648 = vadd.f32 %v236, %v647
      %v649 = vpop.f32.mrb[0].mxu0
      %650 = vmatprep.mubr.f32.mxu0 0.0
      %651 = vmatmul.mubr.f32.gmra.mrb[0].mxu0 %v360
      %v652 = vpop.f32.mrb[0].mxu0
      %v653 = vadd.f32 %v236, %v652
      %v654 = vpop.f32.mrb[0].mxu0
      %655 = vmatprep.mubr.f32.mxu0 0.0
      %656 = vmatmul.mubr.f32.gmra.mrb[0].mxu0 %v363
      %v657 = vpop.f32.mrb[0].mxu0
      %v658 = vadd.f32 %v236, %v657
      %v659 = vpop.f32.mrb[0].mxu0
      %660 = vmatprep.mubr.f32.mxu0 0.0
      %661 = vmatmul.mubr.f32.gmra.mrb[0].mxu0 %v366
      %v662 = vpop.f32.mrb[0].mxu0
      %v663 = vadd.f32 %v236, %v662
      %v664 = vpop.f32.mrb[0].mxu0
      %665 = vmatprep.mubr.f32.mxu0 0.0
      %666 = vmatmul.mubr.f32.gmra.mrb[0].mxu0 %v369
      %v667 = vpop.f32.mrb[0].mxu0
      %v668 = vadd.f32 %v236, %v667
      %v669 = vpop.f32.mrb[0].mxu0
      %670 = vmatprep.mubr.f32.mxu0 0.0
      %671 = vmatmul.mubr.f32.gmra.mrb[0].mxu0 %v372
      %v672 = vpop.f32.mrb[0].mxu0
      %v673 = vadd.f32 %v236, %v672
      %v674 = vpop.f32.mrb[0].mxu0
      %675 = vmatprep.mubr.f32.mxu0 0.0
      %676 = vmatmul.mubr.f32.gmra.mrb[0].mxu0 %v375
      %v677 = vpop.f32.mrb[0].mxu0
      %v678 = vadd.f32 %v236, %v677
      %v679 = vpop.f32.mrb[0].mxu0
      %680 = vmatprep.mubr.f32.mxu0 0.0
      %681 = vmatmul.mubr.f32.gmra.mrb[0].mxu0 %v378
      %v682 = vpop.f32.mrb[0].mxu0
      %v683 = vadd.f32 %v236, %v682
      %v684 = vpop.f32.mrb[0].mxu0
      %685 = vmatprep.mubr.f32.mxu0 0.0
      %686 = vmatmul.mubr.f32.gmra.mrb[0].mxu0 %v381
      %v687 = vpop.f32.mrb[0].mxu0
      %v688 = vadd.f32 %v236, %v687
      %v689 = vpop.f32.mrb[0].mxu0
      %690 = vmatprep.mubr.f32.mxu0 0.0
      %691 = vmatmul.mubr.f32.gmra.mrb[0].mxu0 %v384
      %v692 = vpop.f32.mrb[0].mxu0
      %v693 = vadd.f32 %v236, %v692
      %v694 = vpop.f32.mrb[0].mxu0
      %695 = vdwg.mxu0
      %v696 = vtanh.pop %v453
      %v697 = vtanh.pop %v458
      %v698 = vtanh.pop %v463
      %v699 = vtanh.pop %v468
      %v700 = vtanh.pop %v473
      %v701 = vtanh.pop %v478
      %v702 = vtanh.pop %v483
      %v703 = vtanh.pop %v488
      %v704 = vtanh.pop %v493
      %v705 = vtanh.pop %v498
      %v706 = vtanh.pop %v503
      %v707 = vtanh.pop %v508
      %v708 = vtanh.pop %v513
      %v709 = vtanh.pop %v518
      %v710 = vtanh.pop %v523
      %v711 = vtanh.pop %v528
      %v712 = vtanh.pop %v533
      %v713 = vtanh.pop %v538
      %v714 = vtanh.pop %v543
      %v715 = vtanh.pop %v548
      %v716 = vtanh.pop %v553
      %v717 = vtanh.pop %v558
      %v718 = vtanh.pop %v563
      %v719 = vtanh.pop %v568
      %v720 = vtanh.pop %v573
      %v721 = vtanh.pop %v578
      %v722 = vtanh.pop %v583
      %v723 = vtanh.pop %v588
      %v724 = vtanh.pop %v593
      %v725 = vtanh.pop %v598
      %v726 = vtanh.pop %v603
      %v727 = vtanh.pop %v608
      %v728 = vtanh.pop %v613
      %v729 = vtanh.pop %v618
      %v730 = vtanh.pop %v623
      %v731 = vtanh.pop %v628
      %v732 = vtanh.pop %v633
      %v733 = vtanh.pop %v638
      %v734 = vtanh.pop %v643
      %v735 = vtanh.pop %v648
      %v736 = vtanh.pop %v653
      %v737 = vtanh.pop %v658
      %v738 = vtanh.pop %v663
      %v739 = vtanh.pop %v668
      %v740 = vtanh.pop %v673
      %v741 = vtanh.pop %v678
      %v742 = vtanh.pop %v683
      %v743 = vtanh.pop %v688
      %v744 = vtanh.pop %v693
      %745 = vst [vmem:[%s172] sm:$0xff] %v696
      %746 = vst [vmem:[%s172 + $0x8] sm:$0xff] %v697
      %747 = vst [vmem:[%s172 + $0x10] sm:$0xff] %v698
      %748 = vst [vmem:[%s172 + $0x18] sm:$0xff] %v699
      %749 = vst [vmem:[%s172 + $0x20] sm:$0xff] %v700
      %750 = vst [vmem:[%s172 + $0x28] sm:$0xff] %v701
      %751 = vst [vmem:[%s172 + $0x30] sm:$0xff] %v702
      %752 = vst [vmem:[%s172 + $0x38] sm:$0xff] %v703
      %753 = vst [vmem:[%s172 + $0x40] sm:$0xff] %v704
      %754 = vst [vmem:[%s172 + $0x48] sm:$0xff] %v705
      %755 = vst [vmem:[%s172 + $0x50] sm:$0xff] %v706
      %756 = vst [vmem:[%s172 + $0x58] sm:$0xff] %v707
      %757 = vst [vmem:[%s172 + $0x60] sm:$0xff] %v708
      %758 = vst [vmem:[%s172 + $0x68] sm:$0xff] %v709
      %759 = vst [vmem:[%s172 + $0x70] sm:$0xff] %v710
      %760 = vst [vmem:[%s172 + $0x78] sm:$0xff] %v711
      %761 = vst [vmem:[%s172 + $0x80] sm:$0xff] %v712
      %762 = vst [vmem:[%s172 + $0x88] sm:$0xff] %v713
      %763 = vst [vmem:[%s172 + $0x90] sm:$0xff] %v714
      %764 = vst [vmem:[%s172 + $0x98] sm:$0xff] %v715
      %765 = vst [vmem:[%s172 + $0xa0] sm:$0xff] %v716
      %766 = vst [vmem:[%s172 + $0xa8] sm:$0xff] %v717
      %767 = vst [vmem:[%s172 + $0xb0] sm:$0xff] %v718
      %768 = vst [vmem:[%s172 + $0xb8] sm:$0xff] %v719
      %769 = vst [vmem:[%s172 + $0xc0] sm:$0xff] %v720
      %770 = vst [vmem:[%s172 + $0xc8] sm:$0xff] %v721
      %771 = vst [vmem:[%s172 + $0xd0] sm:$0xff] %v722
      %772 = vst [vmem:[%s172 + $0xd8] sm:$0xff] %v723
      %773 = vst [vmem:[%s172 + $0xe0] sm:$0xff] %v724
      %774 = vst [vmem:[%s172 + $0xe8] sm:$0xff] %v725
      %775 = vst [vmem:[%s172 + $0xf0] sm:$0xff] %v726
      %776 = vst [vmem:[%s172 + $0xf8] sm:$0xff] %v727
      %777 = vst [vmem:[%s172 + $0x100] sm:$0xff] %v728
      %778 = vst [vmem:[%s172 + $0x108] sm:$0xff] %v729
      %779 = vst [vmem:[%s172 + $0x110] sm:$0xff] %v730
      %780 = vst [vmem:[%s172 + $0x118] sm:$0xff] %v731
      %781 = vst [vmem:[%s172 + $0x120] sm:$0xff] %v732
      %782 = vst [vmem:[%s172 + $0x128] sm:$0xff] %v733
      %783 = vst [vmem:[%s172 + $0x130] sm:$0xff] %v734
      %784 = vst [vmem:[%s172 + $0x138] sm:$0xff] %v735
      %785 = vst [vmem:[%s172 + $0x140] sm:$0xff] %v736
      %786 = vst [vmem:[%s172 + $0x148] sm:$0xff] %v737
      %787 = vst [vmem:[%s172 + $0x150] sm:$0xff] %v738
      %788 = vst [vmem:[%s172 + $0x158] sm:$0xff] %v739
      %789 = vst [vmem:[%s172 + $0x160] sm:$0xff] %v740
      %790 = vst [vmem:[%s172 + $0x168] sm:$0xff] %v741
      %791 = vst [vmem:[%s172 + $0x170] sm:$0xff] %v742
      %792 = vst [vmem:[%s172 + $0x178] sm:$0xff] %v743
      %793 = vst [vmem:[%s172 + $0x180] sm:$0xff] %v744
      %s794 = smul.u32 49, %s14
      %p795 = scmp.lt.s32.totalorder %s794, 195
      %s796 = scalar_select %p795, %s794, 195
      %s797 = smul.addr %s796, 8
      %s798 = scalar_lea.vmem %s3, %s797
      // Predicated region
      $region33: #{generator_forward.7} parent=31 // pred_check
        %p799 = pneg %p100
      $region34: #{generator_forward.7} parent=31 // pred_check_branch
        %801 = sbr.rel (%p799) target = $region36
      $region35: #{generator_forward.7} parent=31 // pred_region
        %s802 = smul.u32 49, %s14
      $region36: #{generator_forward.7} parent=31 // pred_fallthru
        _
    $region32: #{generator_forward.7} parent=5 // pred_fallthru
      _
    %p803 = scmp.le.s32.totalorder 2, %s9
    // Predicated region
    $region37: #{generator_forward.7} parent=5 // pred_check
      %p804 = pneg %p803
    $region38: #{generator_forward.7} parent=5 // pred_check_branch
      %806 = sbr.rel (%p804) target = $region40
    $region39: #{generator_forward.7} parent=5 // pred_region
      %s807 = ssub.s32 %s9, 2
      // Predicated region
      $region41: #{generator_forward.7} parent=39 // pred_check
        %p808 = pneg %p106
      $region42: #{generator_forward.7} parent=39 // pred_check_branch
        %810 = sbr.rel (%p808) target = $region44
      $region43: #{generator_forward.7} parent=39 // pred_region
        %s811 = smul.u32 49, %s15
        %p812 = scmp.lt.s32.totalorder %s811, 195
        %s813 = scalar_select %p812, %s811, 195
        %s814 = smul.addr %s813, 8
        %s815 = scalar_lea.vmem %s3, %s814
      $region44: #{generator_forward.7} parent=39 // pred_fallthru
        _
    $region40: #{generator_forward.7} parent=5 // pred_fallthru
      _
  $region6: #{generator_forward.7} parent=0 // loop_footer
    %s13 = sadd.s32 1, %s9
  $region7: #{generator_forward.7} parent=0 // loop_footer_branch
    %8 = sbr.rel target = $region3
  $region8: #{generator_forward.7} parent=0 // loop_exit
    _

</llo_original>
